<compile_context>
chip_gen: v6e
topology: v6e:2x2x1
jax: 0.10.0
libtpu: 0.0.40
codegen_flags: <defaults>
</compile_context>

<pallas_src>
import jax
import jax.numpy as jnp
from jax.experimental import pallas as pl
from jax.experimental.pallas import tpu as pltpu

_LANE = 128


def _round_up(x, m):
    return ((x + m - 1) // m) * m


# ----------------------------------------------------------------------------
# Fused multi-layer GC-LSTM kernel (one grid step per node type).
# ----------------------------------------------------------------------------
def _seq_gclstm_kernel(x_ref, adj_ref, w_ref, b_ref, h0_ref, c0_ref,
                       h_out_ref, c_out_ref):
    """Shapes per grid step (all lane-dense, CHP % 128 == 0):
      x_ref    [1, NP, CHP]           bf16 padded node features
      adj_ref  [2, NP, NP]            bf16 {weighted, plain} normalized adj
      w_ref    [1, L, 2*CHP, 4*CHP]   bf16 packed [Wx ; Wh], gate order (i,f,g,o)
      b_ref    [1, L, 1, 4*CHP]       f32 packed gate bias
      h0/c0    [1, L, NP, CHP]        f32 initial hidden / cell state
      outputs  [1, L, NP, CHP]        f32 final hidden / cell state per layer
    """
    num_layers = h_out_ref.shape[1]
    chp = h_out_ref.shape[-1]

    xin = x_ref[0]                                      # bf16 [NP, CHP]
    # num_layers is small & static -> unrolled loop; running state never
    # leaves the chip until the final per-layer writes below.
    for layer in range(num_layers):
        adj = adj_ref[min(layer, 1)]                    # layer 0: edge-weighted
        h_prev = h0_ref[0, layer]                       # f32
        c_prev = c0_ref[0, layer]                       # f32

        # Dense GCN-style aggregation of the hidden state.
        ah = jnp.dot(adj, h_prev.astype(jnp.bfloat16),
                     preferred_element_type=jnp.float32)

        # Single fused MXU push for all four gates: [x | A h] @ [Wx ; Wh] + b.
        xa = jnp.concatenate([xin, ah.astype(jnp.bfloat16)], axis=-1)
        gates = jnp.dot(xa, w_ref[0, layer],
                        preferred_element_type=jnp.float32) + b_ref[0, layer]

        # chp is a multiple of 128 -> every gate slice is lane-aligned.
        i_g = jax.nn.sigmoid(gates[:, 0 * chp:1 * chp])
        f_g = jax.nn.sigmoid(gates[:, 1 * chp:2 * chp])
        g_g = jnp.tanh(gates[:, 2 * chp:3 * chp])
        o_g = jax.nn.sigmoid(gates[:, 3 * chp:4 * chp])

        c_new = f_g * c_prev + i_g * g_g                # f32 cell update
        h_new = o_g * jnp.tanh(c_new)

        h_out_ref[0, layer] = h_new                     # lane-dense f32 stores
        c_out_ref[0, layer] = c_new
        xin = h_new.astype(jnp.bfloat16)                # input to next layer


def seq_gclstm_fused(x, adj, w, b, h0, c0):
    """x:[T,NP,CHP] bf16, adj:[2,NP,NP] bf16, w:[T,L,2CHP,4CHP] bf16,
    b:[T,L,1,4CHP] f32, h0/c0:[T,L,NP,CHP] f32  ->  (h,c) [T,L,NP,CHP] f32."""
    t, np_, chp = x.shape
    num_layers = h0.shape[1]

    spec_x = pl.BlockSpec((1, np_, chp), lambda i: (i, 0, 0))
    spec_adj = pl.BlockSpec((2, np_, np_), lambda i: (0, 0, 0))
    spec_w = pl.BlockSpec((1, num_layers, 2 * chp, 4 * chp),
                          lambda i: (i, 0, 0, 0))
    spec_b = pl.BlockSpec((1, num_layers, 1, 4 * chp), lambda i: (i, 0, 0, 0))
    spec_st = pl.BlockSpec((1, num_layers, np_, chp), lambda i: (i, 0, 0, 0))
    out_sds = jax.ShapeDtypeStruct((t, num_layers, np_, chp), jnp.float32)

    return pl.pallas_call(
        _seq_gclstm_kernel,
        grid=(t,),
        in_specs=[spec_x, spec_adj, spec_w, spec_b, spec_st, spec_st],
        out_specs=(spec_st, spec_st),
        out_shape=(out_sds, out_sds),
        compiler_params=pltpu.CompilerParams(
            dimension_semantics=("parallel",)),   # node-type axis -> v7x 2 TCs
    )(x, adj, w, b, h0, c0)


# ----------------------------------------------------------------------------
# Plain-JAX glue: params, adjacency, packing.
# ----------------------------------------------------------------------------
def _glorot(key, shape):
    fan_in, fan_out = shape
    lim = (6.0 / (fan_in + fan_out)) ** 0.5
    return jax.random.uniform(key, shape, jnp.float32, -lim, lim)


def init_cell_params(key, in_channels, out_channels, bias=True):
    k1, k2 = jax.random.split(key, 2)
    # Gate order (i, f, g, o) must match the reference layout when importing
    # trained weights.  bias=False keeps a structural zero bias (same math at
    # init); bias=True makes it a (zero-initialized) trainable parameter.
    return {
        "wx": _glorot(k1, (in_channels, 4 * out_channels)),
        "wh": _glorot(k2, (out_channels, 4 * out_channels)),
        "b": jnp.zeros((1, 4 * out_channels), jnp.float32),
        "has_bias": bias,
    }


def _pack_gate_weights(wx, wh, b, chp):
    """Pack wx:[Cin,4Ch], wh:[Ch,4Ch], b:[1,4Ch] into lane-padded
    W:[2*CHP,4*CHP] (rows 0..CHP-1 = X path, CHP..2CHP-1 = A·H path) and
    B:[1,4*CHP], with each gate occupying its own CHP-wide lane slot."""
    c_in = wx.shape[0]
    c_h = wh.shape[0]
    w = jnp.zeros((2 * chp, 4 * chp), jnp.float32)
    bb = jnp.zeros((1, 4 * chp), jnp.float32)
    for g in range(4):
        w = w.at[:c_in, g * chp:g * chp + c_h].set(wx[:, g * c_h:(g + 1) * c_h])
        w = w.at[chp:chp + c_h, g * chp:g * chp + c_h].set(
            wh[:, g * c_h:(g + 1) * c_h])
        bb = bb.at[:, g * chp:g * chp + c_h].set(b[:, g * c_h:(g + 1) * c_h])
    return w, bb


def build_dense_adj(edge_index, num_nodes, edge_weight=None):
    """edge_index [2, E] (src, dst) -> dense row-normalized adjacency [N, N]."""
    src, dst = edge_index[0], edge_index[1]
    if edge_weight is None:
        edge_weight = jnp.ones(src.shape[0], jnp.float32)
    adj = jnp.zeros((num_nodes, num_nodes), jnp.float32)
    adj = adj.at[dst, src].add(edge_weight)
    adj = adj + jnp.eye(num_nodes, dtype=jnp.float32)          # self loops
    deg = jnp.sum(adj, axis=1, keepdims=True)
    return adj / jnp.maximum(deg, 1e-6)


class SeqGCLSTMPallas:
    """Pallas port of SeqGCLSTM (seq_len == 1, single relation)."""

    def __init__(self, in_channels_dict, out_channels, num_layers, metadata,
                 key, bias=True, return_all_layers=True):
        out_channels = self._extend_for_multilayer(out_channels, num_layers)
        if len(out_channels) != num_layers:
            raise ValueError("Inconsistent list length.")
        self.in_channels_dict = in_channels_dict
        self.out_channels = out_channels
        self.num_layers = num_layers
        self.metadata = metadata
        self.bias = bias
        self.return_all_layers = return_all_layers
        self.node_types = list(in_channels_dict.keys())

        self.chp = _round_up(
            max(list(in_channels_dict.values()) + list(out_channels)), _LANE)

        # Raw per-layer / per-node-type params (glorot, zero bias).
        self.params = []
        layer_keys = jax.random.split(key, num_layers)
        for i in range(num_layers):
            cur_in = (dict(in_channels_dict) if i == 0 else
                      {nt: out_channels[i - 1] for nt in in_channels_dict})
            self.params.append({
                nt: init_cell_params(jax.random.fold_in(layer_keys[i], j),
                                     cur_in[nt], out_channels[i], bias)
                for j, nt in enumerate(self.node_types)
            })

        # One-time host-side packing into the fused-kernel layout.
        t = len(self.node_types)
        w_all = jnp.zeros((t, num_layers, 2 * self.chp, 4 * self.chp),
                          jnp.float32)
        b_all = jnp.zeros((t, num_layers, 1, 4 * self.chp), jnp.float32)
        for ti, nt in enumerate(self.node_types):
            for li in range(num_layers):
                p = self.params[li][nt]
                w, bb = _pack_gate_weights(p["wx"], p["wh"], p["b"], self.chp)
                w_all = w_all.at[ti, li].set(w)
                b_all = b_all.at[ti, li].set(bb)
        self.w_packed = w_all.astype(jnp.bfloat16)
        self.b_packed = b_all                       # bias add stays f32

    @staticmethod
    def _extend_for_multilayer(param, num_layers):
        if not isinstance(param, list):
            param = [param] * num_layers
        return param

    # ---- graph preprocessing (hoist out of forward; graph is static) -------
    def precompute_graph(self, edge_index_dict, edge_attr, num_nodes):
        edge_type = self.metadata[1][0]
        edge_index = edge_index_dict[edge_type]
        ew = edge_attr[edge_type] if edge_attr is not None else None
        np_ = _round_up(max(num_nodes, 8), _LANE)
        adj = jnp.zeros((2, np_, np_), jnp.float32)
        adj = adj.at[0, :num_nodes, :num_nodes].set(
            build_dense_adj(edge_index, num_nodes, ew))       # layer 0
        adj = adj.at[1, :num_nodes, :num_nodes].set(
            build_dense_adj(edge_index, num_nodes, None))     # layers > 0
        return adj.astype(jnp.bfloat16)

    # ---- state / feature packing -------------------------------------------
    def _pack_x(self, x_dict, np_):
        t = len(self.node_types)
        x_all = jnp.zeros((t, np_, self.chp), jnp.float32)
        for ti, nt in enumerate(self.node_types):
            x = x_dict[nt].astype(jnp.float32)
            x_all = x_all.at[ti, :x.shape[0], :x.shape[1]].set(x)
        return x_all.astype(jnp.bfloat16)

    def _pack_state(self, hidden_state, np_):
        t = len(self.node_types)
        h_all = jnp.zeros((t, self.num_layers, np_, self.chp), jnp.float32)
        c_all = jnp.zeros((t, self.num_layers, np_, self.chp), jnp.float32)
        if hidden_state is not None:
            for li in range(self.num_layers):
                h_d, c_d = hidden_state[li]
                for ti, nt in enumerate(self.node_types):
                    h = h_d[nt].astype(jnp.float32)
                    c = c_d[nt].astype(jnp.float32)
                    h_all = h_all.at[ti, li, :h.shape[0], :h.shape[1]].set(h)
                    c_all = c_all.at[ti, li, :c.shape[0], :c.shape[1]].set(c)
        return h_all, c_all

    # ---- forward -------------------------------------------------------------
    def forward(self, x_dict, edge_index_dict, edge_attr, hidden_state,
                adj_cache=None):
        # seq_len == 1 as in the reference module.
        num_nodes = {nt: x_dict[nt].shape[0] for nt in self.node_types}
        max_nodes = max(num_nodes.values())
        np_ = _round_up(max(max_nodes, 8), _LANE)

        if adj_cache is None:
            adj_cache = self.precompute_graph(edge_index_dict, edge_attr,
                                              num_nodes[self.node_types[0]])

        x_all = self._pack_x(x_dict, np_)
        h0, c0 = self._pack_state(hidden_state, np_)

        h_all, c_all = seq_gclstm_fused(x_all, adj_cache, self.w_packed,
                                        self.b_packed, h0, c0)

        last_state_list = []
        for li in range(self.num_layers):
            ch = self.out_channels[li]
            h_d = {nt: h_all[ti, li, :num_nodes[nt], :ch]
                   for ti, nt in enumerate(self.node_types)}
            c_d = {nt: c_all[ti, li, :num_nodes[nt], :ch]
                   for ti, nt in enumerate(self.node_types)}
            last_state_list.append([h_d, c_d])

        if not self.return_all_layers:
            last_state_list = last_state_list[-1:]
        return last_state_list


if __name__ == "__main__":
    key = jax.random.PRNGKey(0)
    kx, ke, kp = jax.random.split(key, 3)

    N_NODES, C_IN, C_HID, N_LAYERS = 16, 4, 32, 2
    node_types = ["node"]
    edge_types = [("node", "to", "node")]
    metadata = (node_types, edge_types)
    in_channels_dict = {"node": C_IN}

    # Deterministic small graph: bidirectional ring.
    x = jax.random.normal(kx, (N_NODES, C_IN), jnp.float32)
    src = jnp.arange(N_NODES, dtype=jnp.int32)
    dst = (src + 1) % N_NODES
    edge_index = jnp.stack([jnp.concatenate([src, dst]),
                            jnp.concatenate([dst, src])], axis=0)
    edge_attr = jax.random.uniform(ke, (edge_index.shape[1],), jnp.float32,
                                   0.1, 1.0)

    model = SeqGCLSTMPallas(in_channels_dict, C_HID, N_LAYERS, metadata, kp,
                            bias=True, return_all_layers=True)

    # Hoist the adjacency build out of forward (graph is static per call-site).
    adj_cache = model.precompute_graph(
        {edge_types[0]: edge_index}, {edge_types[0]: edge_attr}, N_NODES)

    last_states = model.forward(
        x_dict={"node": x},
        edge_index_dict={edge_types[0]: edge_index},
        edge_attr={edge_types[0]: edge_attr},
        hidden_state=None,
        adj_cache=adj_cache,
    )

    jax.block_until_ready(last_states)
    h_last = last_states[-1][0]["node"]
    c_last = last_states[-1][1]["node"]
    assert h_last.shape == (N_NODES, C_HID) and c_last.shape == (N_NODES, C_HID)
    assert bool(jnp.all(jnp.isfinite(h_last))) and bool(jnp.all(jnp.isfinite(c_last)))
    print("KERNEL_OK")
</pallas_src>

<mosaic_0001>
module attributes {stable_mosaic.version = 11 : i64} {
  func.func @_seq_gclstm_kernel(%arg0: i32, %arg1: memref<1x128x128xbf16, #tpu.memory_space<vmem>>, %arg2: memref<2x128x128xbf16, #tpu.memory_space<vmem>>, %arg3: memref<1x2x256x512xbf16, #tpu.memory_space<vmem>>, %arg4: memref<1x2x1x512xf32, #tpu.memory_space<vmem>>, %arg5: memref<1x2x128x128xf32, #tpu.memory_space<vmem>>, %arg6: memref<1x2x128x128xf32, #tpu.memory_space<vmem>>, %arg7: memref<1x2x128x128xf32, #tpu.memory_space<vmem>>, %arg8: memref<1x2x128x128xf32, #tpu.memory_space<vmem>>) attributes {dimension_semantics = [#tpu.dimension_semantics<parallel>], iteration_bounds = array<i64: 1>, scalar_prefetch = 0 : i64, scratch_operands = 0 : i64, tpu.core_type = #tpu.core_type<tc>, window_params = [{transform_indices = @transform_0, window_bounds = array<i64: 1, 128, 128>}, {pipeline_mode = #tpu.pipeline_mode<synchronous>, transform_indices = @transform_1, window_bounds = array<i64: 2, 128, 128>}, {transform_indices = @transform_2, window_bounds = array<i64: 1, 2, 256, 512>}, {transform_indices = @transform_3, window_bounds = array<i64: 1, 2, 1, 512>}, {transform_indices = @transform_4, window_bounds = array<i64: 1, 2, 128, 128>}, {transform_indices = @transform_5, window_bounds = array<i64: 1, 2, 128, 128>}, {transform_indices = @transform_6, window_bounds = array<i64: 1, 2, 128, 128>}, {transform_indices = @transform_7, window_bounds = array<i64: 1, 2, 128, 128>}]} {
    %c0 = arith.constant 0 : index
    %c0_0 = arith.constant 0 : index
    %c0_1 = arith.constant 0 : index
    %0 = vector.load %arg1[%c0, %c0_0, %c0_1] : memref<1x128x128xbf16, #tpu.memory_space<vmem>>, vector<1x128x128xbf16>
    %1 = vector.shape_cast %0 : vector<1x128x128xbf16> to vector<128x128xbf16>
    %c0_2 = arith.constant 0 : index
    %c0_3 = arith.constant 0 : index
    %c0_4 = arith.constant 0 : index
    %2 = vector.load %arg2[%c0_2, %c0_3, %c0_4] : memref<2x128x128xbf16, #tpu.memory_space<vmem>>, vector<1x128x128xbf16>
    %3 = vector.shape_cast %2 : vector<1x128x128xbf16> to vector<128x128xbf16>
    %c0_5 = arith.constant 0 : index
    %c0_6 = arith.constant 0 : index
    %c0_7 = arith.constant 0 : index
    %c0_8 = arith.constant 0 : index
    %4 = vector.load %arg5[%c0_5, %c0_6, %c0_7, %c0_8] : memref<1x2x128x128xf32, #tpu.memory_space<vmem>>, vector<1x1x128x128xf32>
    %5 = vector.shape_cast %4 : vector<1x1x128x128xf32> to vector<128x128xf32>
    %c0_9 = arith.constant 0 : index
    %c0_10 = arith.constant 0 : index
    %c0_11 = arith.constant 0 : index
    %c0_12 = arith.constant 0 : index
    %6 = vector.load %arg6[%c0_9, %c0_10, %c0_11, %c0_12] : memref<1x2x128x128xf32, #tpu.memory_space<vmem>>, vector<1x1x128x128xf32>
    %7 = vector.shape_cast %6 : vector<1x1x128x128xf32> to vector<128x128xf32>
    %8 = arith.truncf %5 : vector<128x128xf32> to vector<128x128xbf16>
    %cst = arith.constant dense<0.000000e+00> : vector<128x128xf32>
    %9 = tpu.matmul %3, %8, %cst {dimension_numbers = #tpu.dot_dimension_numbers<[1], [0], [0], [1], [0, 0, 1, 1], [], []>} : vector<128x128xbf16>, vector<128x128xbf16>, vector<128x128xf32> -> vector<128x128xf32>
    %10 = arith.truncf %9 : vector<128x128xf32> to vector<128x128xbf16>
    %11 = tpu.concatenate %1, %10 in 1 : vector<128x128xbf16>, vector<128x128xbf16> -> vector<128x256xbf16>
    %c0_13 = arith.constant 0 : index
    %c0_14 = arith.constant 0 : index
    %c0_15 = arith.constant 0 : index
    %c0_16 = arith.constant 0 : index
    %12 = vector.load %arg3[%c0_13, %c0_14, %c0_15, %c0_16] : memref<1x2x256x512xbf16, #tpu.memory_space<vmem>>, vector<1x1x256x512xbf16>
    %13 = vector.shape_cast %12 : vector<1x1x256x512xbf16> to vector<256x512xbf16>
    %cst_17 = arith.constant dense<0.000000e+00> : vector<128x512xf32>
    %14 = tpu.matmul %11, %13, %cst_17 {dimension_numbers = #tpu.dot_dimension_numbers<[1], [0], [0], [1], [0, 0, 1, 1], [], []>} : vector<128x256xbf16>, vector<256x512xbf16>, vector<128x512xf32> -> vector<128x512xf32>
    %c0_18 = arith.constant 0 : index
    %c0_19 = arith.constant 0 : index
    %c0_20 = arith.constant 0 : index
    %c0_21 = arith.constant 0 : index
    %15 = vector.load %arg4[%c0_18, %c0_19, %c0_20, %c0_21] : memref<1x2x1x512xf32, #tpu.memory_space<vmem>>, vector<1x1x1x512xf32>
    %16 = vector.shape_cast %15 : vector<1x1x1x512xf32> to vector<1x512xf32>
    %17 = vector.broadcast %16 : vector<1x512xf32> to vector<128x512xf32>
    %18 = arith.addf %14, %17 : vector<128x512xf32>
    %19 = vector.extract_strided_slice %18 {offsets = [0, 0], sizes = [128, 128], strides = [1, 1]} : vector<128x512xf32> to vector<128x128xf32>
    %20 = arith.negf %19 : vector<128x128xf32>
    %21 = math.exp %20 : vector<128x128xf32>
    %cst_22 = arith.constant 1.000000e+00 : f32
    %22 = vector.broadcast %cst_22 : f32 to vector<128x128xf32>
    %23 = arith.addf %22, %21 : vector<128x128xf32>
    %24 = arith.divf %22, %23 : vector<128x128xf32>
    %25 = vector.extract_strided_slice %18 {offsets = [0, 128], sizes = [128, 128], strides = [1, 1]} : vector<128x512xf32> to vector<128x128xf32>
    %26 = arith.negf %25 : vector<128x128xf32>
    %27 = math.exp %26 : vector<128x128xf32>
    %cst_23 = arith.constant 1.000000e+00 : f32
    %28 = vector.broadcast %cst_23 : f32 to vector<128x128xf32>
    %29 = arith.addf %28, %27 : vector<128x128xf32>
    %30 = arith.divf %28, %29 : vector<128x128xf32>
    %31 = vector.extract_strided_slice %18 {offsets = [0, 256], sizes = [128, 128], strides = [1, 1]} : vector<128x512xf32> to vector<128x128xf32>
    %32 = math.tanh %31 : vector<128x128xf32>
    %33 = vector.extract_strided_slice %18 {offsets = [0, 384], sizes = [128, 128], strides = [1, 1]} : vector<128x512xf32> to vector<128x128xf32>
    %34 = arith.negf %33 : vector<128x128xf32>
    %35 = math.exp %34 : vector<128x128xf32>
    %cst_24 = arith.constant 1.000000e+00 : f32
    %36 = vector.broadcast %cst_24 : f32 to vector<128x128xf32>
    %37 = arith.addf %36, %35 : vector<128x128xf32>
    %38 = arith.divf %36, %37 : vector<128x128xf32>
    %39 = arith.mulf %30, %7 : vector<128x128xf32>
    %40 = arith.mulf %24, %32 : vector<128x128xf32>
    %41 = arith.addf %39, %40 : vector<128x128xf32>
    %42 = math.tanh %41 : vector<128x128xf32>
    %43 = arith.mulf %38, %42 : vector<128x128xf32>
    %c0_25 = arith.constant 0 : index
    %c0_26 = arith.constant 0 : index
    %c0_27 = arith.constant 0 : index
    %c0_28 = arith.constant 0 : index
    %44 = vector.load %arg7[%c0_25, %c0_26, %c0_27, %c0_28] : memref<1x2x128x128xf32, #tpu.memory_space<vmem>>, vector<1x1x128x128xf32>
    %45 = vector.shape_cast %44 : vector<1x1x128x128xf32> to vector<128x128xf32>
    %46 = vector.shape_cast %43 : vector<128x128xf32> to vector<1x1x128x128xf32>
    tpu.vector_store %arg7[%c0_25, %c0_26, %c0_27, %c0_28], %46 {strides = array<i32>} : memref<1x2x128x128xf32, #tpu.memory_space<vmem>>, vector<1x1x128x128xf32>,
    %c0_29 = arith.constant 0 : index
    %c0_30 = arith.constant 0 : index
    %c0_31 = arith.constant 0 : index
    %c0_32 = arith.constant 0 : index
    %47 = vector.load %arg8[%c0_29, %c0_30, %c0_31, %c0_32] : memref<1x2x128x128xf32, #tpu.memory_space<vmem>>, vector<1x1x128x128xf32>
    %48 = vector.shape_cast %47 : vector<1x1x128x128xf32> to vector<128x128xf32>
    %49 = vector.shape_cast %41 : vector<128x128xf32> to vector<1x1x128x128xf32>
    tpu.vector_store %arg8[%c0_29, %c0_30, %c0_31, %c0_32], %49 {strides = array<i32>} : memref<1x2x128x128xf32, #tpu.memory_space<vmem>>, vector<1x1x128x128xf32>,
    %50 = arith.truncf %43 : vector<128x128xf32> to vector<128x128xbf16>
    %c1 = arith.constant 1 : index
    %c0_33 = arith.constant 0 : index
    %c0_34 = arith.constant 0 : index
    %51 = vector.load %arg2[%c1, %c0_33, %c0_34] : memref<2x128x128xbf16, #tpu.memory_space<vmem>>, vector<1x128x128xbf16>
    %52 = vector.shape_cast %51 : vector<1x128x128xbf16> to vector<128x128xbf16>
    %c0_35 = arith.constant 0 : index
    %c1_36 = arith.constant 1 : index
    %c0_37 = arith.constant 0 : index
    %c0_38 = arith.constant 0 : index
    %53 = vector.load %arg5[%c0_35, %c1_36, %c0_37, %c0_38] : memref<1x2x128x128xf32, #tpu.memory_space<vmem>>, vector<1x1x128x128xf32>
    %54 = vector.shape_cast %53 : vector<1x1x128x128xf32> to vector<128x128xf32>
    %c0_39 = arith.constant 0 : index
    %c1_40 = arith.constant 1 : index
    %c0_41 = arith.constant 0 : index
    %c0_42 = arith.constant 0 : index
    %55 = vector.load %arg6[%c0_39, %c1_40, %c0_41, %c0_42] : memref<1x2x128x128xf32, #tpu.memory_space<vmem>>, vector<1x1x128x128xf32>
    %56 = vector.shape_cast %55 : vector<1x1x128x128xf32> to vector<128x128xf32>
    %57 = arith.truncf %54 : vector<128x128xf32> to vector<128x128xbf16>
    %cst_43 = arith.constant dense<0.000000e+00> : vector<128x128xf32>
    %58 = tpu.matmul %52, %57, %cst_43 {dimension_numbers = #tpu.dot_dimension_numbers<[1], [0], [0], [1], [0, 0, 1, 1], [], []>} : vector<128x128xbf16>, vector<128x128xbf16>, vector<128x128xf32> -> vector<128x128xf32>
    %59 = arith.truncf %58 : vector<128x128xf32> to vector<128x128xbf16>
    %60 = tpu.concatenate %50, %59 in 1 : vector<128x128xbf16>, vector<128x128xbf16> -> vector<128x256xbf16>
    %c0_44 = arith.constant 0 : index
    %c1_45 = arith.constant 1 : index
    %c0_46 = arith.constant 0 : index
    %c0_47 = arith.constant 0 : index
    %61 = vector.load %arg3[%c0_44, %c1_45, %c0_46, %c0_47] : memref<1x2x256x512xbf16, #tpu.memory_space<vmem>>, vector<1x1x256x512xbf16>
    %62 = vector.shape_cast %61 : vector<1x1x256x512xbf16> to vector<256x512xbf16>
    %cst_48 = arith.constant dense<0.000000e+00> : vector<128x512xf32>
    %63 = tpu.matmul %60, %62, %cst_48 {dimension_numbers = #tpu.dot_dimension_numbers<[1], [0], [0], [1], [0, 0, 1, 1], [], []>} : vector<128x256xbf16>, vector<256x512xbf16>, vector<128x512xf32> -> vector<128x512xf32>
    %c0_49 = arith.constant 0 : index
    %c1_50 = arith.constant 1 : index
    %c0_51 = arith.constant 0 : index
    %c0_52 = arith.constant 0 : index
    %64 = vector.load %arg4[%c0_49, %c1_50, %c0_51, %c0_52] : memref<1x2x1x512xf32, #tpu.memory_space<vmem>>, vector<1x1x1x512xf32>
    %65 = vector.shape_cast %64 : vector<1x1x1x512xf32> to vector<1x512xf32>
    %66 = vector.broadcast %65 : vector<1x512xf32> to vector<128x512xf32>
    %67 = arith.addf %63, %66 : vector<128x512xf32>
    %68 = vector.extract_strided_slice %67 {offsets = [0, 0], sizes = [128, 128], strides = [1, 1]} : vector<128x512xf32> to vector<128x128xf32>
    %69 = arith.negf %68 : vector<128x128xf32>
    %70 = math.exp %69 : vector<128x128xf32>
    %cst_53 = arith.constant 1.000000e+00 : f32
    %71 = vector.broadcast %cst_53 : f32 to vector<128x128xf32>
    %72 = arith.addf %71, %70 : vector<128x128xf32>
    %73 = arith.divf %71, %72 : vector<128x128xf32>
    %74 = vector.extract_strided_slice %67 {offsets = [0, 128], sizes = [128, 128], strides = [1, 1]} : vector<128x512xf32> to vector<128x128xf32>
    %75 = arith.negf %74 : vector<128x128xf32>
    %76 = math.exp %75 : vector<128x128xf32>
    %cst_54 = arith.constant 1.000000e+00 : f32
    %77 = vector.broadcast %cst_54 : f32 to vector<128x128xf32>
    %78 = arith.addf %77, %76 : vector<128x128xf32>
    %79 = arith.divf %77, %78 : vector<128x128xf32>
    %80 = vector.extract_strided_slice %67 {offsets = [0, 256], sizes = [128, 128], strides = [1, 1]} : vector<128x512xf32> to vector<128x128xf32>
    %81 = math.tanh %80 : vector<128x128xf32>
    %82 = vector.extract_strided_slice %67 {offsets = [0, 384], sizes = [128, 128], strides = [1, 1]} : vector<128x512xf32> to vector<128x128xf32>
    %83 = arith.negf %82 : vector<128x128xf32>
    %84 = math.exp %83 : vector<128x128xf32>
    %cst_55 = arith.constant 1.000000e+00 : f32
    %85 = vector.broadcast %cst_55 : f32 to vector<128x128xf32>
    %86 = arith.addf %85, %84 : vector<128x128xf32>
    %87 = arith.divf %85, %86 : vector<128x128xf32>
    %88 = arith.mulf %79, %56 : vector<128x128xf32>
    %89 = arith.mulf %73, %81 : vector<128x128xf32>
    %90 = arith.addf %88, %89 : vector<128x128xf32>
    %91 = math.tanh %90 : vector<128x128xf32>
    %92 = arith.mulf %87, %91 : vector<128x128xf32>
    %c0_56 = arith.constant 0 : index
    %c1_57 = arith.constant 1 : index
    %c0_58 = arith.constant 0 : index
    %c0_59 = arith.constant 0 : index
    %93 = vector.load %arg7[%c0_56, %c1_57, %c0_58, %c0_59] : memref<1x2x128x128xf32, #tpu.memory_space<vmem>>, vector<1x1x128x128xf32>
    %94 = vector.shape_cast %93 : vector<1x1x128x128xf32> to vector<128x128xf32>
    %95 = vector.shape_cast %92 : vector<128x128xf32> to vector<1x1x128x128xf32>
    tpu.vector_store %arg7[%c0_56, %c1_57, %c0_58, %c0_59], %95 {strides = array<i32>} : memref<1x2x128x128xf32, #tpu.memory_space<vmem>>, vector<1x1x128x128xf32>,
    %c0_60 = arith.constant 0 : index
    %c1_61 = arith.constant 1 : index
    %c0_62 = arith.constant 0 : index
    %c0_63 = arith.constant 0 : index
    %96 = vector.load %arg8[%c0_60, %c1_61, %c0_62, %c0_63] : memref<1x2x128x128xf32, #tpu.memory_space<vmem>>, vector<1x1x128x128xf32>
    %97 = vector.shape_cast %96 : vector<1x1x128x128xf32> to vector<128x128xf32>
    %98 = vector.shape_cast %90 : vector<128x128xf32> to vector<1x1x128x128xf32>
    tpu.vector_store %arg8[%c0_60, %c1_61, %c0_62, %c0_63], %98 {strides = array<i32>} : memref<1x2x128x128xf32, #tpu.memory_space<vmem>>, vector<1x1x128x128xf32>,
    return
  }
  func.func @transform_0(%arg0: i32) -> (i32, i32, i32) {
    %c0_i32 = arith.constant 0 : i32
    %c0_i32_0 = arith.constant 0 : i32
    %c0_i32_1 = arith.constant 0 : i32
    return %arg0, %c0_i32, %c0_i32_0 : i32, i32, i32
  }
  func.func @transform_1(%arg0: i32) -> (i32, i32, i32) {
    %c0_i32 = arith.constant 0 : i32
    %c0_i32_0 = arith.constant 0 : i32
    %c0_i32_1 = arith.constant 0 : i32
    %c0_i32_2 = arith.constant 0 : i32
    return %c0_i32, %c0_i32_0, %c0_i32_1 : i32, i32, i32
  }
  func.func @transform_2(%arg0: i32) -> (i32, i32, i32, i32) {
    %c0_i32 = arith.constant 0 : i32
    %c0_i32_0 = arith.constant 0 : i32
    %c0_i32_1 = arith.constant 0 : i32
    %c0_i32_2 = arith.constant 0 : i32
    return %arg0, %c0_i32, %c0_i32_0, %c0_i32_1 : i32, i32, i32, i32
  }
  func.func @transform_3(%arg0: i32) -> (i32, i32, i32, i32) {
    %c0_i32 = arith.constant 0 : i32
    %c0_i32_0 = arith.constant 0 : i32
    %c0_i32_1 = arith.constant 0 : i32
    %c0_i32_2 = arith.constant 0 : i32
    return %arg0, %c0_i32, %c0_i32_0, %c0_i32_1 : i32, i32, i32, i32
  }
  func.func @transform_4(%arg0: i32) -> (i32, i32, i32, i32) {
    %c0_i32 = arith.constant 0 : i32
    %c0_i32_0 = arith.constant 0 : i32
    %c0_i32_1 = arith.constant 0 : i32
    %c0_i32_2 = arith.constant 0 : i32
    return %arg0, %c0_i32, %c0_i32_0, %c0_i32_1 : i32, i32, i32, i32
  }
  func.func @transform_5(%arg0: i32) -> (i32, i32, i32, i32) {
    %c0_i32 = arith.constant 0 : i32
    %c0_i32_0 = arith.constant 0 : i32
    %c0_i32_1 = arith.constant 0 : i32
    %c0_i32_2 = arith.constant 0 : i32
    return %arg0, %c0_i32, %c0_i32_0, %c0_i32_1 : i32, i32, i32, i32
  }
  func.func @transform_6(%arg0: i32) -> (i32, i32, i32, i32) {
    %c0_i32 = arith.constant 0 : i32
    %c0_i32_0 = arith.constant 0 : i32
    %c0_i32_1 = arith.constant 0 : i32
    %c0_i32_2 = arith.constant 0 : i32
    return %arg0, %c0_i32, %c0_i32_0, %c0_i32_1 : i32, i32, i32, i32
  }
  func.func @transform_7(%arg0: i32) -> (i32, i32, i32, i32) {
    %c0_i32 = arith.constant 0 : i32
    %c0_i32_0 = arith.constant 0 : i32
    %c0_i32_1 = arith.constant 0 : i32
    %c0_i32_2 = arith.constant 0 : i32
    return %arg0, %c0_i32, %c0_i32_0, %c0_i32_1 : i32, i32, i32, i32
  }
}

</mosaic_0001>

<llo_original>
// kernel: tpu_custom_call.1
$region0: #{tpu_custom_call.1}
  #allocation0 [shape = 'u32[]', space=smem, size = 0x4, offset = 0x4, fixed_abs, tag = 'smem constant byte address 0x4 - core index']
  #allocation1 [shape = 'u32[144,128]{1,0:T(1,128)}', space=vmem, size = 0x12000, scoped, tag = 'internal scratch']
  %s0 = inlined_call_operand.hbm [shape: bf16[1,128,128], index: 0, kind: input, shape index: {}]
  %s1 = inlined_call_operand.hbm [shape: bf16[2,128,128], index: 1, kind: input, shape index: {}]
  %s2 = inlined_call_operand.hbm [shape: bf16[1,2,256,512], index: 2, kind: input, shape index: {}]
  %s3 = inlined_call_operand.hbm [shape: f32[1,2,1,512], index: 3, kind: input, shape index: {}]
  %s4 = inlined_call_operand.hbm [shape: f32[1,2,128,128], index: 4, kind: input, shape index: {}]
  %s5 = inlined_call_operand.hbm [shape: f32[1,2,128,128], index: 5, kind: input, shape index: {}]
  %s6 = inlined_call_operand.hbm [shape: f32[1,2,128,128], index: 6, kind: output, shape index: {0}]
  %s7 = inlined_call_operand.hbm [shape: f32[1,2,128,128], index: 7, kind: output, shape index: {1}]
  %8 = xla_tuple %s6, %s7
  %s9 = sld [smem:[#allocation0]]
  $region66: #{tpu_custom_call.1} parent=0
    _
  %s11 = ssub.s32 1, %s9
  %s12 = scalar_select 0, %s11, %s9
  $region1: #{tpu_custom_call.1} parent=0
    #allocation2 [shape = 'u8[32768]{0}', space=vmem, size = 0x8000, scoped, tag = 'input window, operand 0, single buffered']
    #allocation3 [shape = 's32[1]{0}', space=sflag, size = 0x4, scoped, tag = 'scoped memory for tpu_custom_call.1']
    #allocation4 [shape = 's32[1]{0}', space=sflag, size = 0x4, scoped, tag = 'scoped memory for tpu_custom_call.1']
    #allocation5 [shape = 'u8[65536]{0}', space=vmem, size = 0x10000, scoped, tag = 'input window, operand 1, single buffered']
    #allocation6 [shape = 's32[1]{0}', space=sflag, size = 0x4, scoped, tag = 'scoped memory for tpu_custom_call.1']
    #allocation7 [shape = 'u8[524288]{0}', space=vmem, size = 0x80000, scoped, tag = 'input window, operand 2, single buffered']
    #allocation8 [shape = 'u8[4096]{0}', space=vmem, size = 0x1000, scoped, tag = 'input window, operand 3, single buffered']
    #allocation9 [shape = 's32[1]{0}', space=sflag, size = 0x4, scoped, tag = 'scoped memory for tpu_custom_call.1']
    #allocation10 [shape = 'u8[131072]{0}', space=vmem, size = 0x20000, scoped, tag = 'input window, operand 4, single buffered']
    #allocation11 [shape = 'u8[131072]{0}', space=vmem, size = 0x20000, scoped, tag = 'input window, operand 5, single buffered']
    #allocation12 [shape = 's32[1]{0}', space=sflag, size = 0x4, scoped, tag = 'scoped memory for tpu_custom_call.1']
    #allocation13 [shape = 'u8[131072]{0}', space=vmem, size = 0x20000, scoped, tag = 'output window, operand 0, single buffered']
    #allocation14 [shape = 'u8[131072]{0}', space=vmem, size = 0x20000, scoped, tag = 'output window, operand 1, single buffered']
    #allocation15 [shape = 's32[1]{0}', space=sflag, size = 0x4, scoped, tag = 'scoped memory for tpu_custom_call.1']
    %13 = vsyncpa [#allocation3], 0
    %14 = vsyncpa [#allocation6], 0
    %15 = vsyncpa [#allocation9], 0
    %16 = vsyncpa [#allocation12], 0
    %17 = vsyncpa [#allocation4], 0
    %18 = vsyncpa [#allocation15], 0
    // Predicated region
    $region2: #{tpu_custom_call.1} parent=1 // pred_check
      _
    $region3: #{tpu_custom_call.1} parent=1 // pred_check_branch
      %20 = sbr.rel (0) target = $region5
    $region4: #{tpu_custom_call.1} parent=1 // pred_region
      %s22 = ssub.s32 1024, 1024
      %23 = vsyncadd [#allocation3], %s22
      %s24 = sshll.u32 [#allocation2], 4
      %s25 = int_to_ptr.vmem [resolvable:$true] %s24
      %30 = dma.hbm_to_vmem [thread:$0]  %s0, 1024, %s25, [#allocation3], 64, 64, 4
    $region5: #{tpu_custom_call.1} parent=1 // pred_fallthru
      _
    // Predicated region
    $region6: #{tpu_custom_call.1} parent=1 // pred_check
      _
    $region7: #{tpu_custom_call.1} parent=1 // pred_check_branch
      %32 = sbr.rel (0) target = $region9
    $region8: #{tpu_custom_call.1} parent=1 // pred_region
      %s34 = ssub.s32 2048, 2048
      %35 = vsyncadd [#allocation6], %s34
      %s36 = sshll.u32 [#allocation5], 4
      %s37 = int_to_ptr.vmem [resolvable:$true] %s36
      %42 = dma.hbm_to_vmem [thread:$0]  %s1, 2048, %s37, [#allocation6], 64, 64, 4
    $region9: #{tpu_custom_call.1} parent=1 // pred_fallthru
      _
    // Predicated region
    $region10: #{tpu_custom_call.1} parent=1 // pred_check
      _
    $region11: #{tpu_custom_call.1} parent=1 // pred_check_branch
      %44 = sbr.rel (0) target = $region13
    $region12: #{tpu_custom_call.1} parent=1 // pred_region
      %s46 = ssub.s32 16384, 16384
      %47 = vsyncadd [#allocation6], %s46
      %s48 = sshll.u32 [#allocation7], 4
      %s49 = int_to_ptr.vmem [resolvable:$true] %s48
      %54 = dma.hbm_to_vmem [thread:$0]  %s2, 16384, %s49, [#allocation6], 256, 256, 16
    $region13: #{tpu_custom_call.1} parent=1 // pred_fallthru
      _
    // Predicated region
    $region14: #{tpu_custom_call.1} parent=1 // pred_check
      _
    $region15: #{tpu_custom_call.1} parent=1 // pred_check_branch
      %56 = sbr.rel (0) target = $region17
    $region16: #{tpu_custom_call.1} parent=1 // pred_region
      %s58 = ssub.s32 128, 128
      %59 = vsyncadd [#allocation9], %s58
      %s60 = sshll.u32 [#allocation8], 4
      %s61 = int_to_ptr.vmem [resolvable:$true] %s60
      %66 = dma.hbm_to_vmem [thread:$0]  %s3, 128, %s61, [#allocation9], 64, 64, 4
    $region17: #{tpu_custom_call.1} parent=1 // pred_fallthru
      _
    // Predicated region
    $region18: #{tpu_custom_call.1} parent=1 // pred_check
      _
    $region19: #{tpu_custom_call.1} parent=1 // pred_check_branch
      %68 = sbr.rel (0) target = $region21
    $region20: #{tpu_custom_call.1} parent=1 // pred_region
      %s70 = ssub.s32 4096, 4096
      %71 = vsyncadd [#allocation9], %s70
      %s72 = sshll.u32 [#allocation10], 4
      %s73 = int_to_ptr.vmem [resolvable:$true] %s72
      %78 = dma.hbm_to_vmem [thread:$0]  %s4, 4096, %s73, [#allocation9], 128, 128, 8
    $region21: #{tpu_custom_call.1} parent=1 // pred_fallthru
      _
    // Predicated region
    $region22: #{tpu_custom_call.1} parent=1 // pred_check
      _
    $region23: #{tpu_custom_call.1} parent=1 // pred_check_branch
      %80 = sbr.rel (0) target = $region25
    $region24: #{tpu_custom_call.1} parent=1 // pred_region
      %s82 = ssub.s32 4096, 4096
      %83 = vsyncadd [#allocation12], %s82
      %s84 = sshll.u32 [#allocation11], 4
      %s85 = int_to_ptr.vmem [resolvable:$true] %s84
      %90 = dma.hbm_to_vmem [thread:$0]  %s5, 4096, %s85, [#allocation12], 128, 128, 8
    $region25: #{tpu_custom_call.1} parent=1 // pred_fallthru
      _
    // Predicated region
    $region26: #{tpu_custom_call.1} parent=1 // pred_check
      _
    $region27: #{tpu_custom_call.1} parent=1 // pred_check_branch
      %92 = sbr.rel (0) target = $region29
    $region28: #{tpu_custom_call.1} parent=1 // pred_region
      %93 = dma.done [#allocation3], 1024
    $region29: #{tpu_custom_call.1} parent=1 // pred_fallthru
      _
    // Predicated region
    $region30: #{tpu_custom_call.1} parent=1 // pred_check
      _
    $region31: #{tpu_custom_call.1} parent=1 // pred_check_branch
      %95 = sbr.rel (0) target = $region33
    $region32: #{tpu_custom_call.1} parent=1 // pred_region
      %96 = dma.done [#allocation6], 2048
    $region33: #{tpu_custom_call.1} parent=1 // pred_fallthru
      _
    // Predicated region
    $region34: #{tpu_custom_call.1} parent=1 // pred_check
      _
    $region35: #{tpu_custom_call.1} parent=1 // pred_check_branch
      %98 = sbr.rel (0) target = $region37
    $region36: #{tpu_custom_call.1} parent=1 // pred_region
      %99 = dma.done [#allocation6], 16384
    $region37: #{tpu_custom_call.1} parent=1 // pred_fallthru
      _
    // Predicated region
    $region38: #{tpu_custom_call.1} parent=1 // pred_check
      _
    $region39: #{tpu_custom_call.1} parent=1 // pred_check_branch
      %101 = sbr.rel (0) target = $region41
    $region40: #{tpu_custom_call.1} parent=1 // pred_region
      %102 = dma.done [#allocation9], 128
    $region41: #{tpu_custom_call.1} parent=1 // pred_fallthru
      _
    // Predicated region
    $region42: #{tpu_custom_call.1} parent=1 // pred_check
      _
    $region43: #{tpu_custom_call.1} parent=1 // pred_check_branch
      %104 = sbr.rel (0) target = $region45
    $region44: #{tpu_custom_call.1} parent=1 // pred_region
      %105 = dma.done [#allocation9], 4096
    $region45: #{tpu_custom_call.1} parent=1 // pred_fallthru
      _
    // Predicated region
    $region46: #{tpu_custom_call.1} parent=1 // pred_check
      _
    $region47: #{tpu_custom_call.1} parent=1 // pred_check_branch
      %107 = sbr.rel (0) target = $region49
    $region48: #{tpu_custom_call.1} parent=1 // pred_region
      %108 = dma.done [#allocation12], 4096
    $region49: #{tpu_custom_call.1} parent=1 // pred_fallthru
      _
    %v110 = vld [vmem:[#allocation2] sm:$0xf]
    %v111 = vld [vmem:[#allocation2 + $0x4] sm:$0xf]
    %v112 = vld [vmem:[#allocation2 + $0x8] sm:$0xf]
    %v113 = vld [vmem:[#allocation2 + $0xc] sm:$0xf]
    %v114 = vld [vmem:[#allocation2 + $0x10] sm:$0xf]
    %v115 = vld [vmem:[#allocation2 + $0x14] sm:$0xf]
    %v116 = vld [vmem:[#allocation2 + $0x18] sm:$0xf]
    %v117 = vld [vmem:[#allocation2 + $0x1c] sm:$0xf]
    %v118 = vld [vmem:[#allocation2 + $0x20] sm:$0xf]
    %v119 = vld [vmem:[#allocation2 + $0x24] sm:$0xf]
    %v120 = vld [vmem:[#allocation2 + $0x28] sm:$0xf]
    %v121 = vld [vmem:[#allocation2 + $0x2c] sm:$0xf]
    %v122 = vld [vmem:[#allocation2 + $0x30] sm:$0xf]
    %v123 = vld [vmem:[#allocation2 + $0x34] sm:$0xf]
    %v124 = vld [vmem:[#allocation2 + $0x38] sm:$0xf]
    %v125 = vld [vmem:[#allocation2 + $0x3c] sm:$0xf]
    %v126 = vld [vmem:[#allocation5] sm:$0xf]
    %v127 = vld [vmem:[#allocation5 + $0x4] sm:$0xf]
    %v128 = vld [vmem:[#allocation5 + $0x8] sm:$0xf]
    %v129 = vld [vmem:[#allocation5 + $0xc] sm:$0xf]
    %v130 = vld [vmem:[#allocation5 + $0x10] sm:$0xf]
    %v131 = vld [vmem:[#allocation5 + $0x14] sm:$0xf]
    %v132 = vld [vmem:[#allocation5 + $0x18] sm:$0xf]
    %v133 = vld [vmem:[#allocation5 + $0x1c] sm:$0xf]
    %v134 = vld [vmem:[#allocation5 + $0x20] sm:$0xf]
    %v135 = vld [vmem:[#allocation5 + $0x24] sm:$0xf]
    %v136 = vld [vmem:[#allocation5 + $0x28] sm:$0xf]
    %v137 = vld [vmem:[#allocation5 + $0x2c] sm:$0xf]
    %v138 = vld [vmem:[#allocation5 + $0x30] sm:$0xf]
    %v139 = vld [vmem:[#allocation5 + $0x34] sm:$0xf]
    %v140 = vld [vmem:[#allocation5 + $0x38] sm:$0xf]
    %v141 = vld [vmem:[#allocation5 + $0x3c] sm:$0xf]
    %v142 = vld [vmem:[#allocation10] sm:$0xff]
    %v143 = vld [vmem:[#allocation10 + $0x8] sm:$0xff]
    %v144 = vld [vmem:[#allocation10 + $0x10] sm:$0xff]
    %v145 = vld [vmem:[#allocation10 + $0x18] sm:$0xff]
    %v146 = vld [vmem:[#allocation10 + $0x20] sm:$0xff]
    %v147 = vld [vmem:[#allocation10 + $0x28] sm:$0xff]
    %v148 = vld [vmem:[#allocation10 + $0x30] sm:$0xff]
    %v149 = vld [vmem:[#allocation10 + $0x38] sm:$0xff]
    %v150 = vld [vmem:[#allocation10 + $0x40] sm:$0xff]
    %v151 = vld [vmem:[#allocation10 + $0x48] sm:$0xff]
    %v152 = vld [vmem:[#allocation10 + $0x50] sm:$0xff]
    %v153 = vld [vmem:[#allocation10 + $0x58] sm:$0xff]
    %v154 = vld [vmem:[#allocation10 + $0x60] sm:$0xff]
    %v155 = vld [vmem:[#allocation10 + $0x68] sm:$0xff]
    %v156 = vld [vmem:[#allocation10 + $0x70] sm:$0xff]
    %v157 = vld [vmem:[#allocation10 + $0x78] sm:$0xff]
    %v158 = vld [vmem:[#allocation11] sm:$0xff]
    %v159 = vld [vmem:[#allocation11 + $0x8] sm:$0xff]
    %v160 = vld [vmem:[#allocation11 + $0x10] sm:$0xff]
    %v161 = vld [vmem:[#allocation11 + $0x18] sm:$0xff]
    %v162 = vld [vmem:[#allocation11 + $0x20] sm:$0xff]
    %v163 = vld [vmem:[#allocation11 + $0x28] sm:$0xff]
    %v164 = vld [vmem:[#allocation11 + $0x30] sm:$0xff]
    %v165 = vld [vmem:[#allocation11 + $0x38] sm:$0xff]
    %v166 = vld [vmem:[#allocation11 + $0x40] sm:$0xff]
    %v167 = vld [vmem:[#allocation11 + $0x48] sm:$0xff]
    %v168 = vld [vmem:[#allocation11 + $0x50] sm:$0xff]
    %v169 = vld [vmem:[#allocation11 + $0x58] sm:$0xff]
    %v170 = vld [vmem:[#allocation11 + $0x60] sm:$0xff]
    %v171 = vld [vmem:[#allocation11 + $0x68] sm:$0xff]
    %v172 = vld [vmem:[#allocation11 + $0x70] sm:$0xff]
    %v173 = vld [vmem:[#allocation11 + $0x78] sm:$0xff]
    %v174 = vpack.c.bf16 %v143, %v142
    %v175 = vpack.c.bf16 %v145, %v144
    %v176 = vpack.c.bf16 %v147, %v146
    %v177 = vpack.c.bf16 %v149, %v148
    %v178 = vpack.c.bf16 %v151, %v150
    %v179 = vpack.c.bf16 %v153, %v152
    %v180 = vpack.c.bf16 %v155, %v154
    %v181 = vpack.c.bf16 %v157, %v156
    %v198 = vunpack.c.l.b16 %v126
    %v199 = vunpack.c.l.b16 %v127
    %v200 = vunpack.c.l.b16 %v128
    %v201 = vunpack.c.l.b16 %v129
    %v202 = vunpack.c.l.b16 %v130
    %v203 = vunpack.c.l.b16 %v131
    %v204 = vunpack.c.l.b16 %v132
    %v205 = vunpack.c.l.b16 %v133
    %v206 = vunpack.c.l.b16 %v134
    %v207 = vunpack.c.l.b16 %v135
    %v208 = vunpack.c.l.b16 %v136
    %v209 = vunpack.c.l.b16 %v137
    %v210 = vunpack.c.l.b16 %v138
    %v211 = vunpack.c.l.b16 %v139
    %v212 = vunpack.c.l.b16 %v140
    %v213 = vunpack.c.l.b16 %v141
    %v214 = vpack.c.b16 %v199, %v198
    %v215 = vpack.c.b16 %v201, %v200
    %v216 = vpack.c.b16 %v203, %v202
    %v217 = vpack.c.b16 %v205, %v204
    %v218 = vpack.c.b16 %v207, %v206
    %v219 = vpack.c.b16 %v209, %v208
    %v220 = vpack.c.b16 %v211, %v210
    %v221 = vpack.c.b16 %v213, %v212
    %230 = vmatprep.subr.bf16.mxu0 0
    %231 = vmatpush1.bf16.msra.mxu0 %v181
    %232 = vmatprep.subr.bf16.mxu0 0
    %233 = vmatpush1.bf16.msra.mxu0 %v180
    %234 = vmatprep.subr.bf16.mxu0 0
    %235 = vmatpush1.bf16.msra.mxu0 %v179
    %236 = vmatprep.subr.bf16.mxu0 0
    %237 = vmatpush1.bf16.msra.mxu0 %v178
    %238 = vmatprep.subr.bf16.mxu0 0
    %239 = vmatpush1.bf16.msra.mxu0 %v177
    %240 = vmatprep.subr.bf16.mxu0 0
    %241 = vmatpush1.bf16.msra.mxu0 %v176
    %242 = vmatprep.subr.bf16.mxu0 0
    %243 = vmatpush1.bf16.msra.mxu0 %v175
    %244 = vmatprep.subr.bf16.mxu0 0
    %245 = vmatpush1.bf16.msra.mxu0 %v174
    %246 = vmatprep.subr.bf16.mxu0 0
    %247 = vmatpush2.bf16.msra.mxu0 0
    %248 = vmatprep.subr.bf16.mxu0 0
    %249 = vmatpush2.bf16.msra.mxu0 0
    %250 = vmatprep.subr.bf16.mxu0 0
    %251 = vmatpush2.bf16.msra.mxu0 0
    %252 = vmatprep.subr.bf16.mxu0 0
    %253 = vmatpush2.bf16.msra.mxu0 0
    %254 = vmatprep.subr.bf16.mxu0 0
    %255 = vmatpush2.bf16.msra.mxu0 0
    %256 = vmatprep.subr.bf16.mxu0 0
    %257 = vmatpush2.bf16.msra.mxu0 0
    %258 = vmatprep.subr.bf16.mxu0 0
    %259 = vmatpush2.bf16.msra.mxu0 0
    %260 = vmatprep.subr.bf16.mxu0 0
    %261 = vmatpush2.bf16.msra.mxu0 0
    %262 = vmatprep.mubr.bf16.mxu0 0
    %263 = vmatmul.mubr.bf16.gmra.mxu0 %v214
    %v264 = vpop.f32.mrf.mxu0
    %v265 = vadd.f32 0.0, %v264
    %v266 = vpop.f32.mrf.mxu0
    %v267 = vpop.f32.mrf.mxu0
    %v268 = vadd.f32 0.0, %v267
    %v269 = vpop.f32.mrf.mxu0
    %270 = vmatprep.mubr.bf16.mxu0 0
    %271 = vmatmul.mubr.bf16.gmra.mxu0 %v215
    %v272 = vpop.f32.mrf.mxu0
    %v273 = vadd.f32 0.0, %v272
    %v274 = vpop.f32.mrf.mxu0
    %v275 = vpop.f32.mrf.mxu0
    %v276 = vadd.f32 0.0, %v275
    %v277 = vpop.f32.mrf.mxu0
    %278 = vmatprep.mubr.bf16.mxu0 0
    %279 = vmatmul.mubr.bf16.gmra.mxu0 %v216
    %v280 = vpop.f32.mrf.mxu0
    %v281 = vadd.f32 0.0, %v280
    %v282 = vpop.f32.mrf.mxu0
    %v283 = vpop.f32.mrf.mxu0
    %v284 = vadd.f32 0.0, %v283
    %v285 = vpop.f32.mrf.mxu0
    %286 = vmatprep.mubr.bf16.mxu0 0
    %287 = vmatmul.mubr.bf16.gmra.mxu0 %v217
    %v288 = vpop.f32.mrf.mxu0
    %v289 = vadd.f32 0.0, %v288
    %v290 = vpop.f32.mrf.mxu0
    %v291 = vpop.f32.mrf.mxu0
    %v292 = vadd.f32 0.0, %v291
    %v293 = vpop.f32.mrf.mxu0
    %294 = vmatprep.mubr.bf16.mxu0 0
    %295 = vmatmul.mubr.bf16.gmra.mxu0 %v218
    %v296 = vpop.f32.mrf.mxu0
    %v297 = vadd.f32 0.0, %v296
    %v298 = vpop.f32.mrf.mxu0
    %v299 = vpop.f32.mrf.mxu0
    %v300 = vadd.f32 0.0, %v299
    %v301 = vpop.f32.mrf.mxu0
    %302 = vmatprep.mubr.bf16.mxu0 0
    %303 = vmatmul.mubr.bf16.gmra.mxu0 %v219
    %v304 = vpop.f32.mrf.mxu0
    %v305 = vadd.f32 0.0, %v304
    %v306 = vpop.f32.mrf.mxu0
    %v307 = vpop.f32.mrf.mxu0
    %v308 = vadd.f32 0.0, %v307
    %v309 = vpop.f32.mrf.mxu0
    %310 = vmatprep.mubr.bf16.mxu0 0
    %311 = vmatmul.mubr.bf16.gmra.mxu0 %v220
    %v312 = vpop.f32.mrf.mxu0
    %v313 = vadd.f32 0.0, %v312
    %v314 = vpop.f32.mrf.mxu0
    %v315 = vpop.f32.mrf.mxu0
    %v316 = vadd.f32 0.0, %v315
    %v317 = vpop.f32.mrf.mxu0
    %318 = vmatprep.mubr.bf16.mxu0 0
    %319 = vmatmul.mubr.bf16.gmra.mxu0 %v221
    %v320 = vpop.f32.mrf.mxu0
    %v321 = vadd.f32 0.0, %v320
    %v322 = vpop.f32.mrf.mxu0
    %v323 = vpop.f32.mrf.mxu0
    %v324 = vadd.f32 0.0, %v323
    %v325 = vpop.f32.mrf.mxu0
    %326 = vdwg.mxu0
    %v327 = vpack.c.bf16 %v268, %v265
    %v328 = vpack.c.bf16 %v276, %v273
    %v329 = vpack.c.bf16 %v284, %v281
    %v330 = vpack.c.bf16 %v292, %v289
    %v331 = vpack.c.bf16 %v300, %v297
    %v332 = vpack.c.bf16 %v308, %v305
    %v333 = vpack.c.bf16 %v316, %v313
    %v334 = vpack.c.bf16 %v324, %v321
    %v351 = vunpack.c.l.b16 %v110
    %v352 = vunpack.c.l.b16 %v111
    %v353 = vunpack.c.l.b16 %v112
    %v354 = vunpack.c.l.b16 %v113
    %v355 = vunpack.c.l.b16 %v114
    %v356 = vunpack.c.l.b16 %v115
    %v357 = vunpack.c.l.b16 %v116
    %v358 = vunpack.c.l.b16 %v117
    %v359 = vunpack.c.l.b16 %v118
    %v360 = vunpack.c.l.b16 %v119
    %v361 = vunpack.c.l.b16 %v120
    %v362 = vunpack.c.l.b16 %v121
    %v363 = vunpack.c.l.b16 %v122
    %v364 = vunpack.c.l.b16 %v123
    %v365 = vunpack.c.l.b16 %v124
    %v366 = vunpack.c.l.b16 %v125
    %v367 = vpack.c.b16 %v352, %v351
    %v368 = vpack.c.b16 %v354, %v353
    %v369 = vpack.c.b16 %v356, %v355
    %v370 = vpack.c.b16 %v358, %v357
    %v371 = vpack.c.b16 %v360, %v359
    %v372 = vpack.c.b16 %v362, %v361
    %v373 = vpack.c.b16 %v364, %v363
    %v374 = vpack.c.b16 %v366, %v365
    %v383 = vld [vmem:[#allocation7] sm:$0xff]
    %v384 = vld [vmem:[#allocation7 + $0x8] sm:$0xff]
    %v385 = vld [vmem:[#allocation7 + $0x10] sm:$0xff]
    %v386 = vld [vmem:[#allocation7 + $0x18] sm:$0xff]
    %v387 = vld [vmem:[#allocation7 + $0x20] sm:$0xff]
    %v388 = vld [vmem:[#allocation7 + $0x28] sm:$0xff]
    %v389 = vld [vmem:[#allocation7 + $0x30] sm:$0xff]
    %v390 = vld [vmem:[#allocation7 + $0x38] sm:$0xff]
    %v391 = vld [vmem:[#allocation7 + $0x40] sm:$0xff]
    %v392 = vld [vmem:[#allocation7 + $0x48] sm:$0xff]
    %v393 = vld [vmem:[#allocation7 + $0x50] sm:$0xff]
    %v394 = vld [vmem:[#allocation7 + $0x58] sm:$0xff]
    %v395 = vld [vmem:[#allocation7 + $0x60] sm:$0xff]
    %v396 = vld [vmem:[#allocation7 + $0x68] sm:$0xff]
    %v397 = vld [vmem:[#allocation7 + $0x70] sm:$0xff]
    %v398 = vld [vmem:[#allocation7 + $0x78] sm:$0xff]
    %v399 = vld [vmem:[#allocation7 + $0x80] sm:$0xff]
    %v400 = vld [vmem:[#allocation7 + $0x88] sm:$0xff]
    %v401 = vld [vmem:[#allocation7 + $0x90] sm:$0xff]
    %v402 = vld [vmem:[#allocation7 + $0x98] sm:$0xff]
    %v403 = vld [vmem:[#allocation7 + $0xa0] sm:$0xff]
    %v404 = vld [vmem:[#allocation7 + $0xa8] sm:$0xff]
    %v405 = vld [vmem:[#allocation7 + $0xb0] sm:$0xff]
    %v406 = vld [vmem:[#allocation7 + $0xb8] sm:$0xff]
    %v407 = vld [vmem:[#allocation7 + $0xc0] sm:$0xff]
    %v408 = vld [vmem:[#allocation7 + $0xc8] sm:$0xff]
    %v409 = vld [vmem:[#allocation7 + $0xd0] sm:$0xff]
    %v410 = vld [vmem:[#allocation7 + $0xd8] sm:$0xff]
    %v411 = vld [vmem:[#allocation7 + $0xe0] sm:$0xff]
    %v412 = vld [vmem:[#allocation7 + $0xe8] sm:$0xff]
    %v413 = vld [vmem:[#allocation7 + $0xf0] sm:$0xff]
    %v414 = vld [vmem:[#allocation7 + $0xf8] sm:$0xff]
    %v415 = vld [vmem:[#allocation7 + $0x100] sm:$0xff]
    %v416 = vld [vmem:[#allocation7 + $0x108] sm:$0xff]
    %v417 = vld [vmem:[#allocation7 + $0x110] sm:$0xff]
    %v418 = vld [vmem:[#allocation7 + $0x118] sm:$0xff]
    %v419 = vld [vmem:[#allocation7 + $0x120] sm:$0xff]
    %v420 = vld [vmem:[#allocation7 + $0x128] sm:$0xff]
    %v421 = vld [vmem:[#allocation7 + $0x130] sm:$0xff]
    %v422 = vld [vmem:[#allocation7 + $0x138] sm:$0xff]
    %v423 = vld [vmem:[#allocation7 + $0x140] sm:$0xff]
    %v424 = vld [vmem:[#allocation7 + $0x148] sm:$0xff]
    %v425 = vld [vmem:[#allocation7 + $0x150] sm:$0xff]
    %v426 = vld [vmem:[#allocation7 + $0x158] sm:$0xff]
    %v427 = vld [vmem:[#allocation7 + $0x160] sm:$0xff]
    %v428 = vld [vmem:[#allocation7 + $0x168] sm:$0xff]
    %v429 = vld [vmem:[#allocation7 + $0x170] sm:$0xff]
    %v430 = vld [vmem:[#allocation7 + $0x178] sm:$0xff]
    %v431 = vld [vmem:[#allocation7 + $0x180] sm:$0xff]
    %v432 = vld [vmem:[#allocation7 + $0x188] sm:$0xff]
    %v433 = vld [vmem:[#allocation7 + $0x190] sm:$0xff]
    %v434 = vld [vmem:[#allocation7 + $0x198] sm:$0xff]
    %v435 = vld [vmem:[#allocation7 + $0x1a0] sm:$0xff]
    %v436 = vld [vmem:[#allocation7 + $0x1a8] sm:$0xff]
    %v437 = vld [vmem:[#allocation7 + $0x1b0] sm:$0xff]
    %v438 = vld [vmem:[#allocation7 + $0x1b8] sm:$0xff]
    %v439 = vld [vmem:[#allocation7 + $0x1c0] sm:$0xff]
    %v440 = vld [vmem:[#allocation7 + $0x1c8] sm:$0xff]
    %v441 = vld [vmem:[#allocation7 + $0x1d0] sm:$0xff]
    %v442 = vld [vmem:[#allocation7 + $0x1d8] sm:$0xff]
    %v443 = vld [vmem:[#allocation7 + $0x1e0] sm:$0xff]
    %v444 = vld [vmem:[#allocation7 + $0x1e8] sm:$0xff]
    %v445 = vld [vmem:[#allocation7 + $0x1f0] sm:$0xff]
    %v446 = vld [vmem:[#allocation7 + $0x1f8] sm:$0xff]
    %v447 = vld [vmem:[#allocation8] sm:$0xf]
    %v449 = vlaneseq
    %v450 = vshrl.u32 %v449, 7
    %v451 = vsub.s32 0, %v450
    %v452 = vrot.slane %v447, %v451
    %v453 = vlaneseq
    %v454 = vshrl.u32 %v453, 7
    %v455 = vsub.s32 1, %v454
    %v456 = vrot.slane %v447, %v455
    %v457 = vlaneseq
    %v458 = vshrl.u32 %v457, 7
    %v459 = vsub.s32 2, %v458
    %v460 = vrot.slane %v447, %v459
    %v461 = vlaneseq
    %v462 = vshrl.u32 %v461, 7
    %v463 = vsub.s32 3, %v462
    %v464 = vrot.slane %v447, %v463
    %v533 = vunpack.c.l.b16 %v383
    %v534 = vunpack.c.h.b16 %v383
    %v535 = vunpack.c.l.b16 %v384
    %v536 = vunpack.c.h.b16 %v384
    %v537 = vunpack.c.l.b16 %v385
    %v538 = vunpack.c.h.b16 %v385
    %v539 = vunpack.c.l.b16 %v386
    %v540 = vunpack.c.h.b16 %v386
    %v541 = vunpack.c.l.b16 %v387
    %v542 = vunpack.c.h.b16 %v387
    %v543 = vunpack.c.l.b16 %v388
    %v544 = vunpack.c.h.b16 %v388
    %v545 = vunpack.c.l.b16 %v389
    %v546 = vunpack.c.h.b16 %v389
    %v547 = vunpack.c.l.b16 %v390
    %v548 = vunpack.c.h.b16 %v390
    %v549 = vunpack.c.l.b16 %v391
    %v550 = vunpack.c.h.b16 %v391
    %v551 = vunpack.c.l.b16 %v392
    %v552 = vunpack.c.h.b16 %v392
    %v553 = vunpack.c.l.b16 %v393
    %v554 = vunpack.c.h.b16 %v393
    %v555 = vunpack.c.l.b16 %v394
    %v556 = vunpack.c.h.b16 %v394
    %v557 = vunpack.c.l.b16 %v395
    %v558 = vunpack.c.h.b16 %v395
    %v559 = vunpack.c.l.b16 %v396
    %v560 = vunpack.c.h.b16 %v396
    %v561 = vunpack.c.l.b16 %v397
    %v562 = vunpack.c.h.b16 %v397
    %v563 = vunpack.c.l.b16 %v398
    %v564 = vunpack.c.h.b16 %v398
    %v565 = vunpack.c.l.b16 %v399
    %v566 = vunpack.c.h.b16 %v399
    %v567 = vunpack.c.l.b16 %v400
    %v568 = vunpack.c.h.b16 %v400
    %v569 = vunpack.c.l.b16 %v401
    %v570 = vunpack.c.h.b16 %v401
    %v571 = vunpack.c.l.b16 %v402
    %v572 = vunpack.c.h.b16 %v402
    %v573 = vunpack.c.l.b16 %v403
    %v574 = vunpack.c.h.b16 %v403
    %v575 = vunpack.c.l.b16 %v404
    %v576 = vunpack.c.h.b16 %v404
    %v577 = vunpack.c.l.b16 %v405
    %v578 = vunpack.c.h.b16 %v405
    %v579 = vunpack.c.l.b16 %v406
    %v580 = vunpack.c.h.b16 %v406
    %v581 = vunpack.c.l.b16 %v407
    %v582 = vunpack.c.h.b16 %v407
    %v583 = vunpack.c.l.b16 %v408
    %v584 = vunpack.c.h.b16 %v408
    %v585 = vunpack.c.l.b16 %v409
    %v586 = vunpack.c.h.b16 %v409
    %v587 = vunpack.c.l.b16 %v410
    %v588 = vunpack.c.h.b16 %v410
    %v589 = vunpack.c.l.b16 %v411
    %v590 = vunpack.c.h.b16 %v411
    %v591 = vunpack.c.l.b16 %v412
    %v592 = vunpack.c.h.b16 %v412
    %v593 = vunpack.c.l.b16 %v413
    %v594 = vunpack.c.h.b16 %v413
    %v595 = vunpack.c.l.b16 %v414
    %v596 = vunpack.c.h.b16 %v414
    %v597 = vunpack.c.l.b16 %v415
    %v598 = vunpack.c.h.b16 %v415
    %v599 = vunpack.c.l.b16 %v416
    %v600 = vunpack.c.h.b16 %v416
    %v601 = vunpack.c.l.b16 %v417
    %v602 = vunpack.c.h.b16 %v417
    %v603 = vunpack.c.l.b16 %v418
    %v604 = vunpack.c.h.b16 %v418
    %v605 = vunpack.c.l.b16 %v419
    %v606 = vunpack.c.h.b16 %v419
    %v607 = vunpack.c.l.b16 %v420
    %v608 = vunpack.c.h.b16 %v420
    %v609 = vunpack.c.l.b16 %v421
    %v610 = vunpack.c.h.b16 %v421
    %v611 = vunpack.c.l.b16 %v422
    %v612 = vunpack.c.h.b16 %v422
    %v613 = vunpack.c.l.b16 %v423
    %v614 = vunpack.c.h.b16 %v423
    %v615 = vunpack.c.l.b16 %v424
    %v616 = vunpack.c.h.b16 %v424
    %v617 = vunpack.c.l.b16 %v425
    %v618 = vunpack.c.h.b16 %v425
    %v619 = vunpack.c.l.b16 %v426
    %v620 = vunpack.c.h.b16 %v426
    %v621 = vunpack.c.l.b16 %v427
    %v622 = vunpack.c.h.b16 %v427
    %v623 = vunpack.c.l.b16 %v428
    %v624 = vunpack.c.h.b16 %v428
    %v625 = vunpack.c.l.b16 %v429
    %v626 = vunpack.c.h.b16 %v429
    %v627 = vunpack.c.l.b16 %v430
    %v628 = vunpack.c.h.b16 %v430
    %v629 = vunpack.c.l.b16 %v431
    %v630 = vunpack.c.h.b16 %v431
    %v631 = vunpack.c.l.b16 %v432
    %v632 = vunpack.c.h.b16 %v432
    %v633 = vunpack.c.l.b16 %v433
    %v634 = vunpack.c.h.b16 %v433
    %v635 = vunpack.c.l.b16 %v434
    %v636 = vunpack.c.h.b16 %v434
    %v637 = vunpack.c.l.b16 %v435
    %v638 = vunpack.c.h.b16 %v435
    %v639 = vunpack.c.l.b16 %v436
    %v640 = vunpack.c.h.b16 %v436
    %v641 = vunpack.c.l.b16 %v437
    %v642 = vunpack.c.h.b16 %v437
    %v643 = vunpack.c.l.b16 %v438
    %v644 = vunpack.c.h.b16 %v438
    %v645 = vunpack.c.l.b16 %v439
    %v646 = vunpack.c.h.b16 %v439
    %v647 = vunpack.c.l.b16 %v440
    %v648 = vunpack.c.h.b16 %v440
    %v649 = vunpack.c.l.b16 %v441
    %v650 = vunpack.c.h.b16 %v441
    %v651 = vunpack.c.l.b16 %v442
    %v652 = vunpack.c.h.b16 %v442
    %v653 = vunpack.c.l.b16 %v443
    %v654 = vunpack.c.h.b16 %v443
    %v655 = vunpack.c.l.b16 %v444
    %v656 = vunpack.c.h.b16 %v444
    %v657 = vunpack.c.l.b16 %v445
    %v658 = vunpack.c.h.b16 %v445
    %v659 = vunpack.c.l.b16 %v446
    %v660 = vunpack.c.h.b16 %v446
    %v661 = vpack.c.b16 %v537, %v533
    %v662 = vpack.c.b16 %v538, %v534
    %v663 = vpack.c.b16 %v539, %v535
    %v664 = vpack.c.b16 %v540, %v536
    %v665 = vpack.c.b16 %v545, %v541
    %v666 = vpack.c.b16 %v546, %v542
    %v667 = vpack.c.b16 %v547, %v543
    %v668 = vpack.c.b16 %v548, %v544
    %v669 = vpack.c.b16 %v553, %v549
    %v670 = vpack.c.b16 %v554, %v550
    %v671 = vpack.c.b16 %v555, %v551
    %v672 = vpack.c.b16 %v556, %v552
    %v673 = vpack.c.b16 %v561, %v557
    %v674 = vpack.c.b16 %v562, %v558
    %v675 = vpack.c.b16 %v563, %v559
    %v676 = vpack.c.b16 %v564, %v560
    %v677 = vpack.c.b16 %v569, %v565
    %v678 = vpack.c.b16 %v570, %v566
    %v679 = vpack.c.b16 %v571, %v567
    %v680 = vpack.c.b16 %v572, %v568
    %v681 = vpack.c.b16 %v577, %v573
    %v682 = vpack.c.b16 %v578, %v574
    %v683 = vpack.c.b16 %v579, %v575
    %v684 = vpack.c.b16 %v580, %v576
    %v685 = vpack.c.b16 %v585, %v581
    %v686 = vpack.c.b16 %v586, %v582
    %v687 = vpack.c.b16 %v587, %v583
    %v688 = vpack.c.b16 %v588, %v584
    %v689 = vpack.c.b16 %v593, %v589
    %v690 = vpack.c.b16 %v594, %v590
    %v691 = vpack.c.b16 %v595, %v591
    %v692 = vpack.c.b16 %v596, %v592
    %v693 = vpack.c.b16 %v601, %v597
    %v694 = vpack.c.b16 %v602, %v598
    %v695 = vpack.c.b16 %v603, %v599
    %v696 = vpack.c.b16 %v604, %v600
    %v697 = vpack.c.b16 %v609, %v605
    %v698 = vpack.c.b16 %v610, %v606
    %v699 = vpack.c.b16 %v611, %v607
    %v700 = vpack.c.b16 %v612, %v608
    %v701 = vpack.c.b16 %v617, %v613
    %v702 = vpack.c.b16 %v618, %v614
    %v703 = vpack.c.b16 %v619, %v615
    %v704 = vpack.c.b16 %v620, %v616
    %v705 = vpack.c.b16 %v625, %v621
    %v706 = vpack.c.b16 %v626, %v622
    %v707 = vpack.c.b16 %v627, %v623
    %v708 = vpack.c.b16 %v628, %v624
    %v709 = vpack.c.b16 %v633, %v629
    %v710 = vpack.c.b16 %v634, %v630
    %v711 = vpack.c.b16 %v635, %v631
    %v712 = vpack.c.b16 %v636, %v632
    %v713 = vpack.c.b16 %v641, %v637
    %v714 = vpack.c.b16 %v642, %v638
    %v715 = vpack.c.b16 %v643, %v639
    %v716 = vpack.c.b16 %v644, %v640
    %v717 = vpack.c.b16 %v649, %v645
    %v718 = vpack.c.b16 %v650, %v646
    %v719 = vpack.c.b16 %v651, %v647
    %v720 = vpack.c.b16 %v652, %v648
    %v721 = vpack.c.b16 %v657, %v653
    %v722 = vpack.c.b16 %v658, %v654
    %v723 = vpack.c.b16 %v659, %v655
    %v724 = vpack.c.b16 %v660, %v656
    %789 = vmatprep.subr.bf16.mxu0 %v690
    %790 = vmatpush1.bf16.msra.mxu0 %v689
    %791 = vmatprep.subr.bf16.mxu0 %v686
    %792 = vmatpush1.bf16.msra.mxu0 %v685
    %793 = vmatprep.subr.bf16.mxu0 %v682
    %794 = vmatpush1.bf16.msra.mxu0 %v681
    %795 = vmatprep.subr.bf16.mxu0 %v678
    %796 = vmatpush1.bf16.msra.mxu0 %v677
    %797 = vmatprep.subr.bf16.mxu0 %v674
    %798 = vmatpush1.bf16.msra.mxu0 %v673
    %799 = vmatprep.subr.bf16.mxu0 %v670
    %800 = vmatpush1.bf16.msra.mxu0 %v669
    %801 = vmatprep.subr.bf16.mxu0 %v666
    %802 = vmatpush1.bf16.msra.mxu0 %v665
    %803 = vmatprep.subr.bf16.mxu0 %v662
    %804 = vmatpush1.bf16.msra.mxu0 %v661
    %805 = vmatprep.subr.bf16.mxu0 %v722
    %806 = vmatpush2.bf16.msra.mxu0 %v721
    %807 = vmatprep.subr.bf16.mxu0 %v718
    %808 = vmatpush2.bf16.msra.mxu0 %v717
    %809 = vmatprep.subr.bf16.mxu0 %v714
    %810 = vmatpush2.bf16.msra.mxu0 %v713
    %811 = vmatprep.subr.bf16.mxu0 %v710
    %812 = vmatpush2.bf16.msra.mxu0 %v709
    %813 = vmatprep.subr.bf16.mxu0 %v706
    %814 = vmatpush2.bf16.msra.mxu0 %v705
    %815 = vmatprep.subr.bf16.mxu0 %v702
    %816 = vmatpush2.bf16.msra.mxu0 %v701
    %817 = vmatprep.subr.bf16.mxu0 %v698
    %818 = vmatpush2.bf16.msra.mxu0 %v697
    %819 = vmatprep.subr.bf16.mxu0 %v694
    %820 = vmatpush2.bf16.msra.mxu0 %v693
    %821 = vmatprep.mubr.bf16.mxu0 %v327
    %822 = vmatmul.mubr.bf16.gmra.mxu0 %v367
    %v823 = vpop.f32.mrf.mxu0
    %v824 = vadd.f32 %v452, %v823
    %v825 = vpop.f32.mrf.mxu0
    %v826 = vadd.f32 %v456, %v825
    %v827 = vpop.f32.mrf.mxu0
    %v828 = vadd.f32 %v452, %v827
    %v829 = vpop.f32.mrf.mxu0
    %v830 = vadd.f32 %v456, %v829
    %831 = vmatprep.mubr.bf16.mxu0 %v328
    %832 = vmatmul.mubr.bf16.gmra.mxu0 %v368
    %v833 = vpop.f32.mrf.mxu0
    %v834 = vadd.f32 %v452, %v833
    %v835 = vpop.f32.mrf.mxu0
    %v836 = vadd.f32 %v456, %v835
    %v837 = vpop.f32.mrf.mxu0
    %v838 = vadd.f32 %v452, %v837
    %v839 = vpop.f32.mrf.mxu0
    %v840 = vadd.f32 %v456, %v839
    %841 = vmatprep.mubr.bf16.mxu0 %v329
    %842 = vmatmul.mubr.bf16.gmra.mxu0 %v369
    %v843 = vpop.f32.mrf.mxu0
    %v844 = vadd.f32 %v452, %v843
    %v845 = vpop.f32.mrf.mxu0
    %v846 = vadd.f32 %v456, %v845
    %v847 = vpop.f32.mrf.mxu0
    %v848 = vadd.f32 %v452, %v847
    %v849 = vpop.f32.mrf.mxu0
    %v850 = vadd.f32 %v456, %v849
    %851 = vmatprep.mubr.bf16.mxu0 %v330
    %852 = vmatmul.mubr.bf16.gmra.mxu0 %v370
    %v853 = vpop.f32.mrf.mxu0
    %v854 = vadd.f32 %v452, %v853
    %v855 = vpop.f32.mrf.mxu0
    %v856 = vadd.f32 %v456, %v855
    %v857 = vpop.f32.mrf.mxu0
    %v858 = vadd.f32 %v452, %v857
    %v859 = vpop.f32.mrf.mxu0
    %v860 = vadd.f32 %v456, %v859
    %861 = vmatprep.mubr.bf16.mxu0 %v331
    %862 = vmatmul.mubr.bf16.gmra.mxu0 %v371
    %v863 = vpop.f32.mrf.mxu0
    %v864 = vadd.f32 %v452, %v863
    %v865 = vpop.f32.mrf.mxu0
    %v866 = vadd.f32 %v456, %v865
    %v867 = vpop.f32.mrf.mxu0
    %v868 = vadd.f32 %v452, %v867
    %v869 = vpop.f32.mrf.mxu0
    %v870 = vadd.f32 %v456, %v869
    %871 = vmatprep.mubr.bf16.mxu0 %v332
    %872 = vmatmul.mubr.bf16.gmra.mxu0 %v372
    %v873 = vpop.f32.mrf.mxu0
    %v874 = vadd.f32 %v452, %v873
    %v875 = vpop.f32.mrf.mxu0
    %v876 = vadd.f32 %v456, %v875
    %v877 = vpop.f32.mrf.mxu0
    %v878 = vadd.f32 %v452, %v877
    %v879 = vpop.f32.mrf.mxu0
    %v880 = vadd.f32 %v456, %v879
    %881 = vmatprep.mubr.bf16.mxu0 %v333
    %882 = vmatmul.mubr.bf16.gmra.mxu0 %v373
    %v883 = vpop.f32.mrf.mxu0
    %v884 = vadd.f32 %v452, %v883
    %v885 = vpop.f32.mrf.mxu0
    %v886 = vadd.f32 %v456, %v885
    %v887 = vpop.f32.mrf.mxu0
    %v888 = vadd.f32 %v452, %v887
    %v889 = vpop.f32.mrf.mxu0
    %v890 = vadd.f32 %v456, %v889
    %891 = vmatprep.mubr.bf16.mxu0 %v334
    %892 = vmatmul.mubr.bf16.gmra.mxu0 %v374
    %v893 = vpop.f32.mrf.mxu0
    %v894 = vadd.f32 %v452, %v893
    %v895 = vpop.f32.mrf.mxu0
    %v896 = vadd.f32 %v456, %v895
    %v897 = vpop.f32.mrf.mxu0
    %v898 = vadd.f32 %v452, %v897
    %v899 = vpop.f32.mrf.mxu0
    %v900 = vadd.f32 %v456, %v899
    %901 = vdwg.mxu0
    %902 = vmatprep.subr.bf16.mxu0 %v692
    %903 = vmatpush1.bf16.msra.mxu0 %v691
    %904 = vmatprep.subr.bf16.mxu0 %v688
    %905 = vmatpush1.bf16.msra.mxu0 %v687
    %906 = vmatprep.subr.bf16.mxu0 %v684
    %907 = vmatpush1.bf16.msra.mxu0 %v683
    %908 = vmatprep.subr.bf16.mxu0 %v680
    %909 = vmatpush1.bf16.msra.mxu0 %v679
    %910 = vmatprep.subr.bf16.mxu0 %v676
    %911 = vmatpush1.bf16.msra.mxu0 %v675
    %912 = vmatprep.subr.bf16.mxu0 %v672
    %913 = vmatpush1.bf16.msra.mxu0 %v671
    %914 = vmatprep.subr.bf16.mxu0 %v668
    %915 = vmatpush1.bf16.msra.mxu0 %v667
    %916 = vmatprep.subr.bf16.mxu0 %v664
    %917 = vmatpush1.bf16.msra.mxu0 %v663
    %918 = vmatprep.subr.bf16.mxu0 %v724
    %919 = vmatpush2.bf16.msra.mxu0 %v723
    %920 = vmatprep.subr.bf16.mxu0 %v720
    %921 = vmatpush2.bf16.msra.mxu0 %v719
    %922 = vmatprep.subr.bf16.mxu0 %v716
    %923 = vmatpush2.bf16.msra.mxu0 %v715
    %924 = vmatprep.subr.bf16.mxu0 %v712
    %925 = vmatpush2.bf16.msra.mxu0 %v711
    %926 = vmatprep.subr.bf16.mxu0 %v708
    %927 = vmatpush2.bf16.msra.mxu0 %v707
    %928 = vmatprep.subr.bf16.mxu0 %v704
    %929 = vmatpush2.bf16.msra.mxu0 %v703
    %930 = vmatprep.subr.bf16.mxu0 %v700
    %931 = vmatpush2.bf16.msra.mxu0 %v699
    %932 = vmatprep.subr.bf16.mxu0 %v696
    %933 = vmatpush2.bf16.msra.mxu0 %v695
    %934 = vmatprep.mubr.bf16.mxu0 %v327
    %935 = vmatmul.mubr.bf16.gmra.mxu0 %v367
    %v936 = vpop.f32.mrf.mxu0
    %v937 = vadd.f32 %v460, %v936
    %v938 = vpop.f32.mrf.mxu0
    %v939 = vadd.f32 %v464, %v938
    %v940 = vpop.f32.mrf.mxu0
    %v941 = vadd.f32 %v460, %v940
    %v942 = vpop.f32.mrf.mxu0
    %v943 = vadd.f32 %v464, %v942
    %944 = vmatprep.mubr.bf16.mxu0 %v328
    %945 = vmatmul.mubr.bf16.gmra.mxu0 %v368
    %v946 = vpop.f32.mrf.mxu0
    %v947 = vadd.f32 %v460, %v946
    %v948 = vpop.f32.mrf.mxu0
    %v949 = vadd.f32 %v464, %v948
    %v950 = vpop.f32.mrf.mxu0
    %v951 = vadd.f32 %v460, %v950
    %v952 = vpop.f32.mrf.mxu0
    %v953 = vadd.f32 %v464, %v952
    %954 = vmatprep.mubr.bf16.mxu0 %v329
    %955 = vmatmul.mubr.bf16.gmra.mxu0 %v369
    %v956 = vpop.f32.mrf.mxu0
    %v957 = vadd.f32 %v460, %v956
    %v958 = vpop.f32.mrf.mxu0
    %v959 = vadd.f32 %v464, %v958
    %v960 = vpop.f32.mrf.mxu0
    %v961 = vadd.f32 %v460, %v960
    %v962 = vpop.f32.mrf.mxu0
    %v963 = vadd.f32 %v464, %v962
    %964 = vmatprep.mubr.bf16.mxu0 %v330
    %965 = vmatmul.mubr.bf16.gmra.mxu0 %v370
    %v966 = vpop.f32.mrf.mxu0
    %v967 = vadd.f32 %v460, %v966
    %v968 = vpop.f32.mrf.mxu0
    %v969 = vadd.f32 %v464, %v968
    %v970 = vpop.f32.mrf.mxu0
    %v971 = vadd.f32 %v460, %v970
    %v972 = vpop.f32.mrf.mxu0
    %v973 = vadd.f32 %v464, %v972
    %974 = vmatprep.mubr.bf16.mxu0 %v331
    %975 = vmatmul.mubr.bf16.gmra.mxu0 %v371
    %v976 = vpop.f32.mrf.mxu0
    %v977 = vadd.f32 %v460, %v976
    %v978 = vpop.f32.mrf.mxu0
    %v979 = vadd.f32 %v464, %v978
    %v980 = vpop.f32.mrf.mxu0
    %v981 = vadd.f32 %v460, %v980
    %v982 = vpop.f32.mrf.mxu0
    %v983 = vadd.f32 %v464, %v982
    %984 = vmatprep.mubr.bf16.mxu0 %v332
    %985 = vmatmul.mubr.bf16.gmra.mxu0 %v372
    %v986 = vpop.f32.mrf.mxu0
    %v987 = vadd.f32 %v460, %v986
    %v988 = vpop.f32.mrf.mxu0
    %v989 = vadd.f32 %v464, %v988
    %v990 = vpop.f32.mrf.mxu0
    %v991 = vadd.f32 %v460, %v990
    %v992 = vpop.f32.mrf.mxu0
    %v993 = vadd.f32 %v464, %v992
    %994 = vmatprep.mubr.bf16.mxu0 %v333
    %995 = vmatmul.mubr.bf16.gmra.mxu0 %v373
    %v996 = vpop.f32.mrf.mxu0
    %v997 = vadd.f32 %v460, %v996
    %v998 = vpop.f32.mrf.mxu0
    %v999 = vadd.f32 %v464, %v998
    %v1000 = vpop.f32.mrf.mxu0
    %v1001 = vadd.f32 %v460, %v1000
    %v1002 = vpop.f32.mrf.mxu0
    %v1003 = vadd.f32 %v464, %v1002
    %1004 = vmatprep.mubr.bf16.mxu0 %v334
    %1005 = vmatmul.mubr.bf16.gmra.mxu0 %v374
    %v1006 = vpop.f32.mrf.mxu0
    %v1007 = vadd.f32 %v460, %v1006
    %v1008 = vpop.f32.mrf.mxu0
    %v1009 = vadd.f32 %v464, %v1008
    %v1010 = vpop.f32.mrf.mxu0
    %v1011 = vadd.f32 %v460, %v1010
    %v1012 = vpop.f32.mrf.mxu0
    %v1013 = vadd.f32 %v464, %v1012
    %1014 = vdwg.mxu0
    %v1015 = vxor.u32 %v824, 2147483648
    %v1016 = vxor.u32 %v828, 2147483648
    %v1017 = vxor.u32 %v834, 2147483648
    %v1018 = vxor.u32 %v838, 2147483648
    %v1019 = vxor.u32 %v844, 2147483648
    %v1020 = vxor.u32 %v848, 2147483648
    %v1021 = vxor.u32 %v854, 2147483648
    %v1022 = vxor.u32 %v858, 2147483648
    %v1023 = vxor.u32 %v864, 2147483648
    %v1024 = vxor.u32 %v868, 2147483648
    %v1025 = vxor.u32 %v874, 2147483648
    %v1026 = vxor.u32 %v878, 2147483648
    %v1027 = vxor.u32 %v884, 2147483648
    %v1028 = vxor.u32 %v888, 2147483648
    %v1029 = vxor.u32 %v894, 2147483648
    %v1030 = vxor.u32 %v898, 2147483648
    %v1031 = vmul.f32 %v1015, 1.442695
    %v1032 = vpow.pop %v1031
    %v1033 = vmul.f32 %v1016, 1.442695
    %v1034 = vpow.pop %v1033
    %v1035 = vmul.f32 %v1017, 1.442695
    %v1036 = vpow.pop %v1035
    %v1037 = vmul.f32 %v1018, 1.442695
    %v1038 = vpow.pop %v1037
    %v1039 = vmul.f32 %v1019, 1.442695
    %v1040 = vpow.pop %v1039
    %v1041 = vmul.f32 %v1020, 1.442695
    %v1042 = vpow.pop %v1041
    %v1043 = vmul.f32 %v1021, 1.442695
    %v1044 = vpow.pop %v1043
    %v1045 = vmul.f32 %v1022, 1.442695
    %v1046 = vpow.pop %v1045
    %v1047 = vmul.f32 %v1023, 1.442695
    %v1048 = vpow.pop %v1047
    %v1049 = vmul.f32 %v1024, 1.442695
    %v1050 = vpow.pop %v1049
    %v1051 = vmul.f32 %v1025, 1.442695
    %v1052 = vpow.pop %v1051
    %v1053 = vmul.f32 %v1026, 1.442695
    %v1054 = vpow.pop %v1053
    %v1055 = vmul.f32 %v1027, 1.442695
    %v1056 = vpow.pop %v1055
    %v1057 = vmul.f32 %v1028, 1.442695
    %v1058 = vpow.pop %v1057
    %v1059 = vmul.f32 %v1029, 1.442695
    %v1060 = vpow.pop %v1059
    %v1061 = vmul.f32 %v1030, 1.442695
    %v1062 = vpow.pop %v1061
    %v1063 = vadd.f32 %v1032, 1.0
    %v1064 = vadd.f32 %v1034, 1.0
    %v1065 = vadd.f32 %v1036, 1.0
    %v1066 = vadd.f32 %v1038, 1.0
    %v1067 = vadd.f32 %v1040, 1.0
    %v1068 = vadd.f32 %v1042, 1.0
    %v1069 = vadd.f32 %v1044, 1.0
    %v1070 = vadd.f32 %v1046, 1.0
    %v1071 = vadd.f32 %v1048, 1.0
    %v1072 = vadd.f32 %v1050, 1.0
    %v1073 = vadd.f32 %v1052, 1.0
    %v1074 = vadd.f32 %v1054, 1.0
    %v1075 = vadd.f32 %v1056, 1.0
    %v1076 = vadd.f32 %v1058, 1.0
    %v1077 = vadd.f32 %v1060, 1.0
    %v1078 = vadd.f32 %v1062, 1.0
    %v1079 = vrcp.pop %v1063
    %v1080 = vmul.f32 1.0, %v1079
    %v1081 = vrcp.pop %v1064
    %v1082 = vmul.f32 1.0, %v1081
    %v1083 = vrcp.pop %v1065
    %v1084 = vmul.f32 1.0, %v1083
    %v1085 = vrcp.pop %v1066
    %v1086 = vmul.f32 1.0, %v1085
    %v1087 = vrcp.pop %v1067
    %v1088 = vmul.f32 1.0, %v1087
    %v1089 = vrcp.pop %v1068
    %v1090 = vmul.f32 1.0, %v1089
    %v1091 = vrcp.pop %v1069
    %v1092 = vmul.f32 1.0, %v1091
    %v1093 = vrcp.pop %v1070
    %v1094 = vmul.f32 1.0, %v1093
    %v1095 = vrcp.pop %v1071
    %v1096 = vmul.f32 1.0, %v1095
    %v1097 = vrcp.pop %v1072
    %v1098 = vmul.f32 1.0, %v1097
    %v1099 = vrcp.pop %v1073
    %v1100 = vmul.f32 1.0, %v1099
    %v1101 = vrcp.pop %v1074
    %v1102 = vmul.f32 1.0, %v1101
    %v1103 = vrcp.pop %v1075
    %v1104 = vmul.f32 1.0, %v1103
    %v1105 = vrcp.pop %v1076
    %v1106 = vmul.f32 1.0, %v1105
    %v1107 = vrcp.pop %v1077
    %v1108 = vmul.f32 1.0, %v1107
    %v1109 = vrcp.pop %v1078
    %v1110 = vmul.f32 1.0, %v1109
    %v1111 = vxor.u32 %v826, 2147483648
    %v1112 = vxor.u32 %v830, 2147483648
    %v1113 = vxor.u32 %v836, 2147483648
    %v1114 = vxor.u32 %v840, 2147483648
    %v1115 = vxor.u32 %v846, 2147483648
    %v1116 = vxor.u32 %v850, 2147483648
    %v1117 = vxor.u32 %v856, 2147483648
    %v1118 = vxor.u32 %v860, 2147483648
    %v1119 = vxor.u32 %v866, 2147483648
    %v1120 = vxor.u32 %v870, 2147483648
    %v1121 = vxor.u32 %v876, 2147483648
    %v1122 = vxor.u32 %v880, 2147483648
    %v1123 = vxor.u32 %v886, 2147483648
    %v1124 = vxor.u32 %v890, 2147483648
    %v1125 = vxor.u32 %v896, 2147483648
    %v1126 = vxor.u32 %v900, 2147483648
    %v1127 = vmul.f32 %v1111, 1.442695
    %v1128 = vpow.pop %v1127
    %v1129 = vmul.f32 %v1112, 1.442695
    %v1130 = vpow.pop %v1129
    %v1131 = vmul.f32 %v1113, 1.442695
    %v1132 = vpow.pop %v1131
    %v1133 = vmul.f32 %v1114, 1.442695
    %v1134 = vpow.pop %v1133
    %v1135 = vmul.f32 %v1115, 1.442695
    %v1136 = vpow.pop %v1135
    %v1137 = vmul.f32 %v1116, 1.442695
    %v1138 = vpow.pop %v1137
    %v1139 = vmul.f32 %v1117, 1.442695
    %v1140 = vpow.pop %v1139
    %v1141 = vmul.f32 %v1118, 1.442695
    %v1142 = vpow.pop %v1141
    %v1143 = vmul.f32 %v1119, 1.442695
    %v1144 = vpow.pop %v1143
    %v1145 = vmul.f32 %v1120, 1.442695
    %v1146 = vpow.pop %v1145
    %v1147 = vmul.f32 %v1121, 1.442695
    %v1148 = vpow.pop %v1147
    %v1149 = vmul.f32 %v1122, 1.442695
    %v1150 = vpow.pop %v1149
    %v1151 = vmul.f32 %v1123, 1.442695
    %v1152 = vpow.pop %v1151
    %v1153 = vmul.f32 %v1124, 1.442695
    %v1154 = vpow.pop %v1153
    %v1155 = vmul.f32 %v1125, 1.442695
    %v1156 = vpow.pop %v1155
    %v1157 = vmul.f32 %v1126, 1.442695
    %v1158 = vpow.pop %v1157
    %v1159 = vadd.f32 %v1128, 1.0
    %v1160 = vadd.f32 %v1130, 1.0
    %v1161 = vadd.f32 %v1132, 1.0
    %v1162 = vadd.f32 %v1134, 1.0
    %v1163 = vadd.f32 %v1136, 1.0
    %v1164 = vadd.f32 %v1138, 1.0
    %v1165 = vadd.f32 %v1140, 1.0
    %v1166 = vadd.f32 %v1142, 1.0
    %v1167 = vadd.f32 %v1144, 1.0
    %v1168 = vadd.f32 %v1146, 1.0
    %v1169 = vadd.f32 %v1148, 1.0
    %v1170 = vadd.f32 %v1150, 1.0
    %v1171 = vadd.f32 %v1152, 1.0
    %v1172 = vadd.f32 %v1154, 1.0
    %v1173 = vadd.f32 %v1156, 1.0
    %v1174 = vadd.f32 %v1158, 1.0
    %v1175 = vrcp.pop %v1159
    %v1176 = vmul.f32 1.0, %v1175
    %v1177 = vrcp.pop %v1160
    %v1178 = vmul.f32 1.0, %v1177
    %v1179 = vrcp.pop %v1161
    %v1180 = vmul.f32 1.0, %v1179
    %v1181 = vrcp.pop %v1162
    %v1182 = vmul.f32 1.0, %v1181
    %v1183 = vrcp.pop %v1163
    %v1184 = vmul.f32 1.0, %v1183
    %v1185 = vrcp.pop %v1164
    %v1186 = vmul.f32 1.0, %v1185
    %v1187 = vrcp.pop %v1165
    %v1188 = vmul.f32 1.0, %v1187
    %v1189 = vrcp.pop %v1166
    %v1190 = vmul.f32 1.0, %v1189
    %v1191 = vrcp.pop %v1167
    %v1192 = vmul.f32 1.0, %v1191
    %v1193 = vrcp.pop %v1168
    %v1194 = vmul.f32 1.0, %v1193
    %v1195 = vrcp.pop %v1169
    %v1196 = vmul.f32 1.0, %v1195
    %v1197 = vrcp.pop %v1170
    %v1198 = vmul.f32 1.0, %v1197
    %v1199 = vrcp.pop %v1171
    %v1200 = vmul.f32 1.0, %v1199
    %v1201 = vrcp.pop %v1172
    %v1202 = vmul.f32 1.0, %v1201
    %v1203 = vrcp.pop %v1173
    %v1204 = vmul.f32 1.0, %v1203
    %v1205 = vrcp.pop %v1174
    %v1206 = vmul.f32 1.0, %v1205
    %v1207 = vtanh.pop %v937
    %v1208 = vtanh.pop %v941
    %v1209 = vtanh.pop %v947
    %v1210 = vtanh.pop %v951
    %v1211 = vtanh.pop %v957
    %v1212 = vtanh.pop %v961
    %v1213 = vtanh.pop %v967
    %v1214 = vtanh.pop %v971
    %v1215 = vtanh.pop %v977
    %v1216 = vtanh.pop %v981
    %v1217 = vtanh.pop %v987
    %v1218 = vtanh.pop %v991
    %v1219 = vtanh.pop %v997
    %v1220 = vtanh.pop %v1001
    %v1221 = vtanh.pop %v1007
    %v1222 = vtanh.pop %v1011
    %v1223 = vxor.u32 %v939, 2147483648
    %v1224 = vxor.u32 %v943, 2147483648
    %v1225 = vxor.u32 %v949, 2147483648
    %v1226 = vxor.u32 %v953, 2147483648
    %v1227 = vxor.u32 %v959, 2147483648
    %v1228 = vxor.u32 %v963, 2147483648
    %v1229 = vxor.u32 %v969, 2147483648
    %v1230 = vxor.u32 %v973, 2147483648
    %v1231 = vxor.u32 %v979, 2147483648
    %v1232 = vxor.u32 %v983, 2147483648
    %v1233 = vxor.u32 %v989, 2147483648
    %v1234 = vxor.u32 %v993, 2147483648
    %v1235 = vxor.u32 %v999, 2147483648
    %v1236 = vxor.u32 %v1003, 2147483648
    %v1237 = vxor.u32 %v1009, 2147483648
    %v1238 = vxor.u32 %v1013, 2147483648
    %v1239 = vmul.f32 %v1223, 1.442695
    %v1240 = vpow.pop %v1239
    %v1241 = vmul.f32 %v1224, 1.442695
    %v1242 = vpow.pop %v1241
    %v1243 = vmul.f32 %v1225, 1.442695
    %v1244 = vpow.pop %v1243
    %v1245 = vmul.f32 %v1226, 1.442695
    %v1246 = vpow.pop %v1245
    %v1247 = vmul.f32 %v1227, 1.442695
    %v1248 = vpow.pop %v1247
    %v1249 = vmul.f32 %v1228, 1.442695
    %v1250 = vpow.pop %v1249
    %v1251 = vmul.f32 %v1229, 1.442695
    %v1252 = vpow.pop %v1251
    %v1253 = vmul.f32 %v1230, 1.442695
    %v1254 = vpow.pop %v1253
    %v1255 = vmul.f32 %v1231, 1.442695
    %v1256 = vpow.pop %v1255
    %v1257 = vmul.f32 %v1232, 1.442695
    %v1258 = vpow.pop %v1257
    %v1259 = vmul.f32 %v1233, 1.442695
    %v1260 = vpow.pop %v1259
    %v1261 = vmul.f32 %v1234, 1.442695
    %v1262 = vpow.pop %v1261
    %v1263 = vmul.f32 %v1235, 1.442695
    %v1264 = vpow.pop %v1263
    %v1265 = vmul.f32 %v1236, 1.442695
    %v1266 = vpow.pop %v1265
    %v1267 = vmul.f32 %v1237, 1.442695
    %v1268 = vpow.pop %v1267
    %v1269 = vmul.f32 %v1238, 1.442695
    %v1270 = vpow.pop %v1269
    %v1271 = vadd.f32 %v1240, 1.0
    %v1272 = vadd.f32 %v1242, 1.0
    %v1273 = vadd.f32 %v1244, 1.0
    %v1274 = vadd.f32 %v1246, 1.0
    %v1275 = vadd.f32 %v1248, 1.0
    %v1276 = vadd.f32 %v1250, 1.0
    %v1277 = vadd.f32 %v1252, 1.0
    %v1278 = vadd.f32 %v1254, 1.0
    %v1279 = vadd.f32 %v1256, 1.0
    %v1280 = vadd.f32 %v1258, 1.0
    %v1281 = vadd.f32 %v1260, 1.0
    %v1282 = vadd.f32 %v1262, 1.0
    %v1283 = vadd.f32 %v1264, 1.0
    %v1284 = vadd.f32 %v1266, 1.0
    %v1285 = vadd.f32 %v1268, 1.0
    %v1286 = vadd.f32 %v1270, 1.0
    %v1287 = vrcp.pop %v1271
    %v1288 = vmul.f32 1.0, %v1287
    %v1289 = vrcp.pop %v1272
    %v1290 = vmul.f32 1.0, %v1289
    %v1291 = vrcp.pop %v1273
    %v1292 = vmul.f32 1.0, %v1291
    %v1293 = vrcp.pop %v1274
    %v1294 = vmul.f32 1.0, %v1293
    %v1295 = vrcp.pop %v1275
    %v1296 = vmul.f32 1.0, %v1295
    %v1297 = vrcp.pop %v1276
    %v1298 = vmul.f32 1.0, %v1297
    %v1299 = vrcp.pop %v1277
    %v1300 = vmul.f32 1.0, %v1299
    %v1301 = vrcp.pop %v1278
    %v1302 = vmul.f32 1.0, %v1301
    %v1303 = vrcp.pop %v1279
    %v1304 = vmul.f32 1.0, %v1303
    %v1305 = vrcp.pop %v1280
    %v1306 = vmul.f32 1.0, %v1305
    %v1307 = vrcp.pop %v1281
    %v1308 = vmul.f32 1.0, %v1307
    %v1309 = vrcp.pop %v1282
    %v1310 = vmul.f32 1.0, %v1309
    %v1311 = vrcp.pop %v1283
    %v1312 = vmul.f32 1.0, %v1311
    %v1313 = vrcp.pop %v1284
    %v1314 = vmul.f32 1.0, %v1313
    %v1315 = vrcp.pop %v1285
    %v1316 = vmul.f32 1.0, %v1315
    %v1317 = vrcp.pop %v1286
    %v1318 = vmul.f32 1.0, %v1317
    %v1319 = vmul.f32 %v1176, %v158
    %v1320 = vmul.f32 %v1178, %v159
    %v1321 = vmul.f32 %v1180, %v160
    %v1322 = vmul.f32 %v1182, %v161
    %v1323 = vmul.f32 %v1184, %v162
    %v1324 = vmul.f32 %v1186, %v163
    %v1325 = vmul.f32 %v1188, %v164
    %v1326 = vmul.f32 %v1190, %v165
    %v1327 = vmul.f32 %v1192, %v166
    %v1328 = vmul.f32 %v1194, %v167
    %v1329 = vmul.f32 %v1196, %v168
    %v1330 = vmul.f32 %v1198, %v169
    %v1331 = vmul.f32 %v1200, %v170
    %v1332 = vmul.f32 %v1202, %v171
    %v1333 = vmul.f32 %v1204, %v172
    %v1334 = vmul.f32 %v1206, %v173
    %v1335 = vmul.f32 %v1080, %v1207
    %v1336 = vmul.f32 %v1082, %v1208
    %v1337 = vmul.f32 %v1084, %v1209
    %v1338 = vmul.f32 %v1086, %v1210
    %v1339 = vmul.f32 %v1088, %v1211
    %v1340 = vmul.f32 %v1090, %v1212
    %v1341 = vmul.f32 %v1092, %v1213
    %v1342 = vmul.f32 %v1094, %v1214
    %v1343 = vmul.f32 %v1096, %v1215
    %v1344 = vmul.f32 %v1098, %v1216
    %v1345 = vmul.f32 %v1100, %v1217
    %v1346 = vmul.f32 %v1102, %v1218
    %v1347 = vmul.f32 %v1104, %v1219
    %v1348 = vmul.f32 %v1106, %v1220
    %v1349 = vmul.f32 %v1108, %v1221
    %v1350 = vmul.f32 %v1110, %v1222
    %v1351 = vadd.f32 %v1319, %v1335
    %v1352 = vadd.f32 %v1320, %v1336
    %v1353 = vadd.f32 %v1321, %v1337
    %v1354 = vadd.f32 %v1322, %v1338
    %v1355 = vadd.f32 %v1323, %v1339
    %v1356 = vadd.f32 %v1324, %v1340
    %v1357 = vadd.f32 %v1325, %v1341
    %v1358 = vadd.f32 %v1326, %v1342
    %v1359 = vadd.f32 %v1327, %v1343
    %v1360 = vadd.f32 %v1328, %v1344
    %v1361 = vadd.f32 %v1329, %v1345
    %v1362 = vadd.f32 %v1330, %v1346
    %v1363 = vadd.f32 %v1331, %v1347
    %v1364 = vadd.f32 %v1332, %v1348
    %v1365 = vadd.f32 %v1333, %v1349
    %v1366 = vadd.f32 %v1334, %v1350
    %v1367 = vtanh.pop %v1351
    %v1368 = vtanh.pop %v1352
    %v1369 = vtanh.pop %v1353
    %v1370 = vtanh.pop %v1354
    %v1371 = vtanh.pop %v1355
    %v1372 = vtanh.pop %v1356
    %v1373 = vtanh.pop %v1357
    %v1374 = vtanh.pop %v1358
    %v1375 = vtanh.pop %v1359
    %v1376 = vtanh.pop %v1360
    %v1377 = vtanh.pop %v1361
    %v1378 = vtanh.pop %v1362
    %v1379 = vtanh.pop %v1363
    %v1380 = vtanh.pop %v1364
    %v1381 = vtanh.pop %v1365
    %v1382 = vtanh.pop %v1366
    %v1383 = vmul.f32 %v1288, %v1367
    %v1384 = vmul.f32 %v1290, %v1368
    %v1385 = vmul.f32 %v1292, %v1369
    %v1386 = vmul.f32 %v1294, %v1370
    %v1387 = vmul.f32 %v1296, %v1371
    %v1388 = vmul.f32 %v1298, %v1372
    %v1389 = vmul.f32 %v1300, %v1373
    %v1390 = vmul.f32 %v1302, %v1374
    %v1391 = vmul.f32 %v1304, %v1375
    %v1392 = vmul.f32 %v1306, %v1376
    %v1393 = vmul.f32 %v1308, %v1377
    %v1394 = vmul.f32 %v1310, %v1378
    %v1395 = vmul.f32 %v1312, %v1379
    %v1396 = vmul.f32 %v1314, %v1380
    %v1397 = vmul.f32 %v1316, %v1381
    %v1398 = vmul.f32 %v1318, %v1382
    %1399 = vst [vmem:[#allocation13] sm:$0xff] %v1383
    %1400 = vst [vmem:[#allocation13 + $0x8] sm:$0xff] %v1384
    %1401 = vst [vmem:[#allocation13 + $0x10] sm:$0xff] %v1385
    %1402 = vst [vmem:[#allocation13 + $0x18] sm:$0xff] %v1386
    %1403 = vst [vmem:[#allocation13 + $0x20] sm:$0xff] %v1387
    %1404 = vst [vmem:[#allocation13 + $0x28] sm:$0xff] %v1388
    %1405 = vst [vmem:[#allocation13 + $0x30] sm:$0xff] %v1389
    %1406 = vst [vmem:[#allocation13 + $0x38] sm:$0xff] %v1390
    %1407 = vst [vmem:[#allocation13 + $0x40] sm:$0xff] %v1391
    %1408 = vst [vmem:[#allocation13 + $0x48] sm:$0xff] %v1392
    %1409 = vst [vmem:[#allocation13 + $0x50] sm:$0xff] %v1393
    %1410 = vst [vmem:[#allocation13 + $0x58] sm:$0xff] %v1394
    %1411 = vst [vmem:[#allocation13 + $0x60] sm:$0xff] %v1395
    %1412 = vst [vmem:[#allocation13 + $0x68] sm:$0xff] %v1396
    %1413 = vst [vmem:[#allocation13 + $0x70] sm:$0xff] %v1397
    %1414 = vst [vmem:[#allocation13 + $0x78] sm:$0xff] %v1398
    %1415 = vst [vmem:[#allocation14] sm:$0xff] %v1351
    %1416 = vst [vmem:[#allocation14 + $0x8] sm:$0xff] %v1352
    %1417 = vst [vmem:[#allocation14 + $0x10] sm:$0xff] %v1353
    %1418 = vst [vmem:[#allocation14 + $0x18] sm:$0xff] %v1354
    %1419 = vst [vmem:[#allocation14 + $0x20] sm:$0xff] %v1355
    %1420 = vst [vmem:[#allocation14 + $0x28] sm:$0xff] %v1356
    %1421 = vst [vmem:[#allocation14 + $0x30] sm:$0xff] %v1357
    %1422 = vst [vmem:[#allocation14 + $0x38] sm:$0xff] %v1358
    %1423 = vst [vmem:[#allocation14 + $0x40] sm:$0xff] %v1359
    %1424 = vst [vmem:[#allocation14 + $0x48] sm:$0xff] %v1360
    %1425 = vst [vmem:[#allocation14 + $0x50] sm:$0xff] %v1361
    %1426 = vst [vmem:[#allocation14 + $0x58] sm:$0xff] %v1362
    %1427 = vst [vmem:[#allocation14 + $0x60] sm:$0xff] %v1363
    %1428 = vst [vmem:[#allocation14 + $0x68] sm:$0xff] %v1364
    %1429 = vst [vmem:[#allocation14 + $0x70] sm:$0xff] %v1365
    %1430 = vst [vmem:[#allocation14 + $0x78] sm:$0xff] %v1366
    %v1431 = vpack.c.bf16 %v1384, %v1383
    %v1432 = vpack.c.bf16 %v1386, %v1385
    %v1433 = vpack.c.bf16 %v1388, %v1387
    %v1434 = vpack.c.bf16 %v1390, %v1389
    %v1435 = vpack.c.bf16 %v1392, %v1391
    %v1436 = vpack.c.bf16 %v1394, %v1393
    %v1437 = vpack.c.bf16 %v1396, %v1395
    %v1438 = vpack.c.bf16 %v1398, %v1397
    %s1439 = scalar_lea.vmem [#allocation5], 64
    %v1440 = vld [vmem:[%s1439] sm:$0xf]
    %v1441 = vld [vmem:[%s1439 + $0x4] sm:$0xf]
    %v1442 = vld [vmem:[%s1439 + $0x8] sm:$0xf]
    %v1443 = vld [vmem:[%s1439 + $0xc] sm:$0xf]
    %v1444 = vld [vmem:[%s1439 + $0x10] sm:$0xf]
    %v1445 = vld [vmem:[%s1439 + $0x14] sm:$0xf]
    %v1446 = vld [vmem:[%s1439 + $0x18] sm:$0xf]
    %v1447 = vld [vmem:[%s1439 + $0x1c] sm:$0xf]
    %v1448 = vld [vmem:[%s1439 + $0x20] sm:$0xf]
    %v1449 = vld [vmem:[%s1439 + $0x24] sm:$0xf]
    %v1450 = vld [vmem:[%s1439 + $0x28] sm:$0xf]
    %v1451 = vld [vmem:[%s1439 + $0x2c] sm:$0xf]
    %v1452 = vld [vmem:[%s1439 + $0x30] sm:$0xf]
    %v1453 = vld [vmem:[%s1439 + $0x34] sm:$0xf]
    %v1454 = vld [vmem:[%s1439 + $0x38] sm:$0xf]
    %v1455 = vld [vmem:[%s1439 + $0x3c] sm:$0xf]
    %s1456 = scalar_lea.vmem [#allocation10], 128
    %v1457 = vld [vmem:[%s1456] sm:$0xff]
    %v1458 = vld [vmem:[%s1456 + $0x8] sm:$0xff]
    %v1459 = vld [vmem:[%s1456 + $0x10] sm:$0xff]
    %v1460 = vld [vmem:[%s1456 + $0x18] sm:$0xff]
    %v1461 = vld [vmem:[%s1456 + $0x20] sm:$0xff]
    %v1462 = vld [vmem:[%s1456 + $0x28] sm:$0xff]
    %v1463 = vld [vmem:[%s1456 + $0x30] sm:$0xff]
    %v1464 = vld [vmem:[%s1456 + $0x38] sm:$0xff]
    %v1465 = vld [vmem:[%s1456 + $0x40] sm:$0xff]
    %v1466 = vld [vmem:[%s1456 + $0x48] sm:$0xff]
    %v1467 = vld [vmem:[%s1456 + $0x50] sm:$0xff]
    %v1468 = vld [vmem:[%s1456 + $0x58] sm:$0xff]
    %v1469 = vld [vmem:[%s1456 + $0x60] sm:$0xff]
    %v1470 = vld [vmem:[%s1456 + $0x68] sm:$0xff]
    %v1471 = vld [vmem:[%s1456 + $0x70] sm:$0xff]
    %v1472 = vld [vmem:[%s1456 + $0x78] sm:$0xff]
    %s1473 = scalar_lea.vmem [#allocation11], 128
    %v1474 = vld [vmem:[%s1473] sm:$0xff]
    %v1475 = vld [vmem:[%s1473 + $0x8] sm:$0xff]
    %v1476 = vld [vmem:[%s1473 + $0x10] sm:$0xff]
    %v1477 = vld [vmem:[%s1473 + $0x18] sm:$0xff]
    %v1478 = vld [vmem:[%s1473 + $0x20] sm:$0xff]
    %v1479 = vld [vmem:[%s1473 + $0x28] sm:$0xff]
    %v1480 = vld [vmem:[%s1473 + $0x30] sm:$0xff]
    %v1481 = vld [vmem:[%s1473 + $0x38] sm:$0xff]
    %v1482 = vld [vmem:[%s1473 + $0x40] sm:$0xff]
    %v1483 = vld [vmem:[%s1473 + $0x48] sm:$0xff]
    %v1484 = vld [vmem:[%s1473 + $0x50] sm:$0xff]
    %v1485 = vld [vmem:[%s1473 + $0x58] sm:$0xff]
    %v1486 = vld [vmem:[%s1473 + $0x60] sm:$0xff]
    %v1487 = vld [vmem:[%s1473 + $0x68] sm:$0xff]
    %v1488 = vld [vmem:[%s1473 + $0x70] sm:$0xff]
    %v1489 = vld [vmem:[%s1473 + $0x78] sm:$0xff]
    %v1490 = vpack.c.bf16 %v1458, %v1457
    %v1491 = vpack.c.bf16 %v1460, %v1459
    %v1492 = vpack.c.bf16 %v1462, %v1461
    %v1493 = vpack.c.bf16 %v1464, %v1463
    %v1494 = vpack.c.bf16 %v1466, %v1465
    %v1495 = vpack.c.bf16 %v1468, %v1467
    %v1496 = vpack.c.bf16 %v1470, %v1469
    %v1497 = vpack.c.bf16 %v1472, %v1471
    %v1514 = vunpack.c.l.b16 %v1440
    %v1515 = vunpack.c.l.b16 %v1441
    %v1516 = vunpack.c.l.b16 %v1442
    %v1517 = vunpack.c.l.b16 %v1443
    %v1518 = vunpack.c.l.b16 %v1444
    %v1519 = vunpack.c.l.b16 %v1445
    %v1520 = vunpack.c.l.b16 %v1446
    %v1521 = vunpack.c.l.b16 %v1447
    %v1522 = vunpack.c.l.b16 %v1448
    %v1523 = vunpack.c.l.b16 %v1449
    %v1524 = vunpack.c.l.b16 %v1450
    %v1525 = vunpack.c.l.b16 %v1451
    %v1526 = vunpack.c.l.b16 %v1452
    %v1527 = vunpack.c.l.b16 %v1453
    %v1528 = vunpack.c.l.b16 %v1454
    %v1529 = vunpack.c.l.b16 %v1455
    %v1530 = vpack.c.b16 %v1515, %v1514
    %v1531 = vpack.c.b16 %v1517, %v1516
    %v1532 = vpack.c.b16 %v1519, %v1518
    %v1533 = vpack.c.b16 %v1521, %v1520
    %v1534 = vpack.c.b16 %v1523, %v1522
    %v1535 = vpack.c.b16 %v1525, %v1524
    %v1536 = vpack.c.b16 %v1527, %v1526
    %v1537 = vpack.c.b16 %v1529, %v1528
    %1546 = vmatprep.subr.bf16.mxu0 0
    %1547 = vmatpush1.bf16.msra.mxu0 %v1497
    %1548 = vmatprep.subr.bf16.mxu0 0
    %1549 = vmatpush1.bf16.msra.mxu0 %v1496
    %1550 = vmatprep.subr.bf16.mxu0 0
    %1551 = vmatpush1.bf16.msra.mxu0 %v1495
    %1552 = vmatprep.subr.bf16.mxu0 0
    %1553 = vmatpush1.bf16.msra.mxu0 %v1494
    %1554 = vmatprep.subr.bf16.mxu0 0
    %1555 = vmatpush1.bf16.msra.mxu0 %v1493
    %1556 = vmatprep.subr.bf16.mxu0 0
    %1557 = vmatpush1.bf16.msra.mxu0 %v1492
    %1558 = vmatprep.subr.bf16.mxu0 0
    %1559 = vmatpush1.bf16.msra.mxu0 %v1491
    %1560 = vmatprep.subr.bf16.mxu0 0
    %1561 = vmatpush1.bf16.msra.mxu0 %v1490
    %1562 = vmatprep.subr.bf16.mxu0 0
    %1563 = vmatpush2.bf16.msra.mxu0 0
    %1564 = vmatprep.subr.bf16.mxu0 0
    %1565 = vmatpush2.bf16.msra.mxu0 0
    %1566 = vmatprep.subr.bf16.mxu0 0
    %1567 = vmatpush2.bf16.msra.mxu0 0
    %1568 = vmatprep.subr.bf16.mxu0 0
    %1569 = vmatpush2.bf16.msra.mxu0 0
    %1570 = vmatprep.subr.bf16.mxu0 0
    %1571 = vmatpush2.bf16.msra.mxu0 0
    %1572 = vmatprep.subr.bf16.mxu0 0
    %1573 = vmatpush2.bf16.msra.mxu0 0
    %1574 = vmatprep.subr.bf16.mxu0 0
    %1575 = vmatpush2.bf16.msra.mxu0 0
    %1576 = vmatprep.subr.bf16.mxu0 0
    %1577 = vmatpush2.bf16.msra.mxu0 0
    %1578 = vmatprep.mubr.bf16.mxu0 0
    %1579 = vmatmul.mubr.bf16.gmra.mxu0 %v1530
    %v1580 = vpop.f32.mrf.mxu0
    %v1581 = vadd.f32 0.0, %v1580
    %v1582 = vpop.f32.mrf.mxu0
    %v1583 = vpop.f32.mrf.mxu0
    %v1584 = vadd.f32 0.0, %v1583
    %v1585 = vpop.f32.mrf.mxu0
    %1586 = vmatprep.mubr.bf16.mxu0 0
    %1587 = vmatmul.mubr.bf16.gmra.mxu0 %v1531
    %v1588 = vpop.f32.mrf.mxu0
    %v1589 = vadd.f32 0.0, %v1588
    %v1590 = vpop.f32.mrf.mxu0
    %v1591 = vpop.f32.mrf.mxu0
    %v1592 = vadd.f32 0.0, %v1591
    %v1593 = vpop.f32.mrf.mxu0
    %1594 = vmatprep.mubr.bf16.mxu0 0
    %1595 = vmatmul.mubr.bf16.gmra.mxu0 %v1532
    %v1596 = vpop.f32.mrf.mxu0
    %v1597 = vadd.f32 0.0, %v1596
    %v1598 = vpop.f32.mrf.mxu0
    %v1599 = vpop.f32.mrf.mxu0
    %v1600 = vadd.f32 0.0, %v1599
    %v1601 = vpop.f32.mrf.mxu0
    %1602 = vmatprep.mubr.bf16.mxu0 0
    %1603 = vmatmul.mubr.bf16.gmra.mxu0 %v1533
    %v1604 = vpop.f32.mrf.mxu0
    %v1605 = vadd.f32 0.0, %v1604
    %v1606 = vpop.f32.mrf.mxu0
    %v1607 = vpop.f32.mrf.mxu0
    %v1608 = vadd.f32 0.0, %v1607
    %v1609 = vpop.f32.mrf.mxu0
    %1610 = vmatprep.mubr.bf16.mxu0 0
    %1611 = vmatmul.mubr.bf16.gmra.mxu0 %v1534
    %v1612 = vpop.f32.mrf.mxu0
    %v1613 = vadd.f32 0.0, %v1612
    %v1614 = vpop.f32.mrf.mxu0
    %v1615 = vpop.f32.mrf.mxu0
    %v1616 = vadd.f32 0.0, %v1615
    %v1617 = vpop.f32.mrf.mxu0
    %1618 = vmatprep.mubr.bf16.mxu0 0
    %1619 = vmatmul.mubr.bf16.gmra.mxu0 %v1535
    %v1620 = vpop.f32.mrf.mxu0
    %v1621 = vadd.f32 0.0, %v1620
    %v1622 = vpop.f32.mrf.mxu0
    %v1623 = vpop.f32.mrf.mxu0
    %v1624 = vadd.f32 0.0, %v1623
    %v1625 = vpop.f32.mrf.mxu0
    %1626 = vmatprep.mubr.bf16.mxu0 0
    %1627 = vmatmul.mubr.bf16.gmra.mxu0 %v1536
    %v1628 = vpop.f32.mrf.mxu0
    %v1629 = vadd.f32 0.0, %v1628
    %v1630 = vpop.f32.mrf.mxu0
    %v1631 = vpop.f32.mrf.mxu0
    %v1632 = vadd.f32 0.0, %v1631
    %v1633 = vpop.f32.mrf.mxu0
    %1634 = vmatprep.mubr.bf16.mxu0 0
    %1635 = vmatmul.mubr.bf16.gmra.mxu0 %v1537
    %v1636 = vpop.f32.mrf.mxu0
    %v1637 = vadd.f32 0.0, %v1636
    %v1638 = vpop.f32.mrf.mxu0
    %v1639 = vpop.f32.mrf.mxu0
    %v1640 = vadd.f32 0.0, %v1639
    %v1641 = vpop.f32.mrf.mxu0
    %1642 = vdwg.mxu0
    %v1643 = vpack.c.bf16 %v1584, %v1581
    %v1644 = vpack.c.bf16 %v1592, %v1589
    %v1645 = vpack.c.bf16 %v1600, %v1597
    %v1646 = vpack.c.bf16 %v1608, %v1605
    %v1647 = vpack.c.bf16 %v1616, %v1613
    %v1648 = vpack.c.bf16 %v1624, %v1621
    %v1649 = vpack.c.bf16 %v1632, %v1629
    %v1650 = vpack.c.bf16 %v1640, %v1637
    %s1651 = scalar_lea.vmem [#allocation7], 512
    %v1652 = vld [vmem:[%s1651] sm:$0xff]
    %v1653 = vld [vmem:[%s1651 + $0x8] sm:$0xff]
    %v1654 = vld [vmem:[%s1651 + $0x10] sm:$0xff]
    %v1655 = vld [vmem:[%s1651 + $0x18] sm:$0xff]
    %v1656 = vld [vmem:[%s1651 + $0x20] sm:$0xff]
    %v1657 = vld [vmem:[%s1651 + $0x28] sm:$0xff]
    %v1658 = vld [vmem:[%s1651 + $0x30] sm:$0xff]
    %v1659 = vld [vmem:[%s1651 + $0x38] sm:$0xff]
    %v1660 = vld [vmem:[%s1651 + $0x40] sm:$0xff]
    %v1661 = vld [vmem:[%s1651 + $0x48] sm:$0xff]
    %v1662 = vld [vmem:[%s1651 + $0x50] sm:$0xff]
    %v1663 = vld [vmem:[%s1651 + $0x58] sm:$0xff]
    %v1664 = vld [vmem:[%s1651 + $0x60] sm:$0xff]
    %v1665 = vld [vmem:[%s1651 + $0x68] sm:$0xff]
    %v1666 = vld [vmem:[%s1651 + $0x70] sm:$0xff]
    %v1667 = vld [vmem:[%s1651 + $0x78] sm:$0xff]
    %v1668 = vld [vmem:[%s1651 + $0x80] sm:$0xff]
    %v1669 = vld [vmem:[%s1651 + $0x88] sm:$0xff]
    %v1670 = vld [vmem:[%s1651 + $0x90] sm:$0xff]
    %v1671 = vld [vmem:[%s1651 + $0x98] sm:$0xff]
    %v1672 = vld [vmem:[%s1651 + $0xa0] sm:$0xff]
    %v1673 = vld [vmem:[%s1651 + $0xa8] sm:$0xff]
    %v1674 = vld [vmem:[%s1651 + $0xb0] sm:$0xff]
    %v1675 = vld [vmem:[%s1651 + $0xb8] sm:$0xff]
    %v1676 = vld [vmem:[%s1651 + $0xc0] sm:$0xff]
    %v1677 = vld [vmem:[%s1651 + $0xc8] sm:$0xff]
    %v1678 = vld [vmem:[%s1651 + $0xd0] sm:$0xff]
    %v1679 = vld [vmem:[%s1651 + $0xd8] sm:$0xff]
    %v1680 = vld [vmem:[%s1651 + $0xe0] sm:$0xff]
    %v1681 = vld [vmem:[%s1651 + $0xe8] sm:$0xff]
    %v1682 = vld [vmem:[%s1651 + $0xf0] sm:$0xff]
    %v1683 = vld [vmem:[%s1651 + $0xf8] sm:$0xff]
    %v1684 = vld [vmem:[%s1651 + $0x100] sm:$0xff]
    %v1685 = vld [vmem:[%s1651 + $0x108] sm:$0xff]
    %v1686 = vld [vmem:[%s1651 + $0x110] sm:$0xff]
    %v1687 = vld [vmem:[%s1651 + $0x118] sm:$0xff]
    %v1688 = vld [vmem:[%s1651 + $0x120] sm:$0xff]
    %v1689 = vld [vmem:[%s1651 + $0x128] sm:$0xff]
    %v1690 = vld [vmem:[%s1651 + $0x130] sm:$0xff]
    %v1691 = vld [vmem:[%s1651 + $0x138] sm:$0xff]
    %v1692 = vld [vmem:[%s1651 + $0x140] sm:$0xff]
    %v1693 = vld [vmem:[%s1651 + $0x148] sm:$0xff]
    %v1694 = vld [vmem:[%s1651 + $0x150] sm:$0xff]
    %v1695 = vld [vmem:[%s1651 + $0x158] sm:$0xff]
    %v1696 = vld [vmem:[%s1651 + $0x160] sm:$0xff]
    %v1697 = vld [vmem:[%s1651 + $0x168] sm:$0xff]
    %v1698 = vld [vmem:[%s1651 + $0x170] sm:$0xff]
    %v1699 = vld [vmem:[%s1651 + $0x178] sm:$0xff]
    %v1700 = vld [vmem:[%s1651 + $0x180] sm:$0xff]
    %v1701 = vld [vmem:[%s1651 + $0x188] sm:$0xff]
    %v1702 = vld [vmem:[%s1651 + $0x190] sm:$0xff]
    %v1703 = vld [vmem:[%s1651 + $0x198] sm:$0xff]
    %v1704 = vld [vmem:[%s1651 + $0x1a0] sm:$0xff]
    %v1705 = vld [vmem:[%s1651 + $0x1a8] sm:$0xff]
    %v1706 = vld [vmem:[%s1651 + $0x1b0] sm:$0xff]
    %v1707 = vld [vmem:[%s1651 + $0x1b8] sm:$0xff]
    %v1708 = vld [vmem:[%s1651 + $0x1c0] sm:$0xff]
    %v1709 = vld [vmem:[%s1651 + $0x1c8] sm:$0xff]
    %v1710 = vld [vmem:[%s1651 + $0x1d0] sm:$0xff]
    %v1711 = vld [vmem:[%s1651 + $0x1d8] sm:$0xff]
    %v1712 = vld [vmem:[%s1651 + $0x1e0] sm:$0xff]
    %v1713 = vld [vmem:[%s1651 + $0x1e8] sm:$0xff]
    %v1714 = vld [vmem:[%s1651 + $0x1f0] sm:$0xff]
    %v1715 = vld [vmem:[%s1651 + $0x1f8] sm:$0xff]
    %s1716 = scalar_lea.vmem [#allocation8], 4
    %v1717 = vld [vmem:[%s1716] sm:$0xf]
    %v1719 = vlaneseq
    %v1720 = vshrl.u32 %v1719, 7
    %v1721 = vsub.s32 0, %v1720
    %v1722 = vrot.slane %v1717, %v1721
    %v1723 = vlaneseq
    %v1724 = vshrl.u32 %v1723, 7
    %v1725 = vsub.s32 1, %v1724
    %v1726 = vrot.slane %v1717, %v1725
    %v1727 = vlaneseq
    %v1728 = vshrl.u32 %v1727, 7
    %v1729 = vsub.s32 2, %v1728
    %v1730 = vrot.slane %v1717, %v1729
    %v1731 = vlaneseq
    %v1732 = vshrl.u32 %v1731, 7
    %v1733 = vsub.s32 3, %v1732
    %v1734 = vrot.slane %v1717, %v1733
    %v1803 = vunpack.c.l.b16 %v1652
    %v1804 = vunpack.c.h.b16 %v1652
    %v1805 = vunpack.c.l.b16 %v1653
    %v1806 = vunpack.c.h.b16 %v1653
    %v1807 = vunpack.c.l.b16 %v1654
    %v1808 = vunpack.c.h.b16 %v1654
    %v1809 = vunpack.c.l.b16 %v1655
    %v1810 = vunpack.c.h.b16 %v1655
    %v1811 = vunpack.c.l.b16 %v1656
    %v1812 = vunpack.c.h.b16 %v1656
    %v1813 = vunpack.c.l.b16 %v1657
    %v1814 = vunpack.c.h.b16 %v1657
    %v1815 = vunpack.c.l.b16 %v1658
    %v1816 = vunpack.c.h.b16 %v1658
    %v1817 = vunpack.c.l.b16 %v1659
    %v1818 = vunpack.c.h.b16 %v1659
    %v1819 = vunpack.c.l.b16 %v1660
    %v1820 = vunpack.c.h.b16 %v1660
    %v1821 = vunpack.c.l.b16 %v1661
    %v1822 = vunpack.c.h.b16 %v1661
    %v1823 = vunpack.c.l.b16 %v1662
    %v1824 = vunpack.c.h.b16 %v1662
    %v1825 = vunpack.c.l.b16 %v1663
    %v1826 = vunpack.c.h.b16 %v1663
    %v1827 = vunpack.c.l.b16 %v1664
    %v1828 = vunpack.c.h.b16 %v1664
    %v1829 = vunpack.c.l.b16 %v1665
    %v1830 = vunpack.c.h.b16 %v1665
    %v1831 = vunpack.c.l.b16 %v1666
    %v1832 = vunpack.c.h.b16 %v1666
    %v1833 = vunpack.c.l.b16 %v1667
    %v1834 = vunpack.c.h.b16 %v1667
    %v1835 = vunpack.c.l.b16 %v1668
    %v1836 = vunpack.c.h.b16 %v1668
    %v1837 = vunpack.c.l.b16 %v1669
    %v1838 = vunpack.c.h.b16 %v1669
    %v1839 = vunpack.c.l.b16 %v1670
    %v1840 = vunpack.c.h.b16 %v1670
    %v1841 = vunpack.c.l.b16 %v1671
    %v1842 = vunpack.c.h.b16 %v1671
    %v1843 = vunpack.c.l.b16 %v1672
    %v1844 = vunpack.c.h.b16 %v1672
    %v1845 = vunpack.c.l.b16 %v1673
    %v1846 = vunpack.c.h.b16 %v1673
    %v1847 = vunpack.c.l.b16 %v1674
    %v1848 = vunpack.c.h.b16 %v1674
    %v1849 = vunpack.c.l.b16 %v1675
    %v1850 = vunpack.c.h.b16 %v1675
    %v1851 = vunpack.c.l.b16 %v1676
    %v1852 = vunpack.c.h.b16 %v1676
    %v1853 = vunpack.c.l.b16 %v1677
    %v1854 = vunpack.c.h.b16 %v1677
    %v1855 = vunpack.c.l.b16 %v1678
    %v1856 = vunpack.c.h.b16 %v1678
    %v1857 = vunpack.c.l.b16 %v1679
    %v1858 = vunpack.c.h.b16 %v1679
    %v1859 = vunpack.c.l.b16 %v1680
    %v1860 = vunpack.c.h.b16 %v1680
    %v1861 = vunpack.c.l.b16 %v1681
    %v1862 = vunpack.c.h.b16 %v1681
    %v1863 = vunpack.c.l.b16 %v1682
    %v1864 = vunpack.c.h.b16 %v1682
    %v1865 = vunpack.c.l.b16 %v1683
    %v1866 = vunpack.c.h.b16 %v1683
    %v1867 = vunpack.c.l.b16 %v1684
    %v1868 = vunpack.c.h.b16 %v1684
    %v1869 = vunpack.c.l.b16 %v1685
    %v1870 = vunpack.c.h.b16 %v1685
    %v1871 = vunpack.c.l.b16 %v1686
    %v1872 = vunpack.c.h.b16 %v1686
    %v1873 = vunpack.c.l.b16 %v1687
    %v1874 = vunpack.c.h.b16 %v1687
    %v1875 = vunpack.c.l.b16 %v1688
    %v1876 = vunpack.c.h.b16 %v1688
    %v1877 = vunpack.c.l.b16 %v1689
    %v1878 = vunpack.c.h.b16 %v1689
    %v1879 = vunpack.c.l.b16 %v1690
    %v1880 = vunpack.c.h.b16 %v1690
    %v1881 = vunpack.c.l.b16 %v1691
    %v1882 = vunpack.c.h.b16 %v1691
    %v1883 = vunpack.c.l.b16 %v1692
    %v1884 = vunpack.c.h.b16 %v1692
    %v1885 = vunpack.c.l.b16 %v1693
    %v1886 = vunpack.c.h.b16 %v1693
    %v1887 = vunpack.c.l.b16 %v1694
    %v1888 = vunpack.c.h.b16 %v1694
    %v1889 = vunpack.c.l.b16 %v1695
    %v1890 = vunpack.c.h.b16 %v1695
    %v1891 = vunpack.c.l.b16 %v1696
    %v1892 = vunpack.c.h.b16 %v1696
    %v1893 = vunpack.c.l.b16 %v1697
    %v1894 = vunpack.c.h.b16 %v1697
    %v1895 = vunpack.c.l.b16 %v1698
    %v1896 = vunpack.c.h.b16 %v1698
    %v1897 = vunpack.c.l.b16 %v1699
    %v1898 = vunpack.c.h.b16 %v1699
    %v1899 = vunpack.c.l.b16 %v1700
    %v1900 = vunpack.c.h.b16 %v1700
    %v1901 = vunpack.c.l.b16 %v1701
    %v1902 = vunpack.c.h.b16 %v1701
    %v1903 = vunpack.c.l.b16 %v1702
    %v1904 = vunpack.c.h.b16 %v1702
    %v1905 = vunpack.c.l.b16 %v1703
    %v1906 = vunpack.c.h.b16 %v1703
    %v1907 = vunpack.c.l.b16 %v1704
    %v1908 = vunpack.c.h.b16 %v1704
    %v1909 = vunpack.c.l.b16 %v1705
    %v1910 = vunpack.c.h.b16 %v1705
    %v1911 = vunpack.c.l.b16 %v1706
    %v1912 = vunpack.c.h.b16 %v1706
    %v1913 = vunpack.c.l.b16 %v1707
    %v1914 = vunpack.c.h.b16 %v1707
    %v1915 = vunpack.c.l.b16 %v1708
    %v1916 = vunpack.c.h.b16 %v1708
    %v1917 = vunpack.c.l.b16 %v1709
    %v1918 = vunpack.c.h.b16 %v1709
    %v1919 = vunpack.c.l.b16 %v1710
    %v1920 = vunpack.c.h.b16 %v1710
    %v1921 = vunpack.c.l.b16 %v1711
    %v1922 = vunpack.c.h.b16 %v1711
    %v1923 = vunpack.c.l.b16 %v1712
    %v1924 = vunpack.c.h.b16 %v1712
    %v1925 = vunpack.c.l.b16 %v1713
    %v1926 = vunpack.c.h.b16 %v1713
    %v1927 = vunpack.c.l.b16 %v1714
    %v1928 = vunpack.c.h.b16 %v1714
    %v1929 = vunpack.c.l.b16 %v1715
    %v1930 = vunpack.c.h.b16 %v1715
    %v1931 = vpack.c.b16 %v1807, %v1803
    %v1932 = vpack.c.b16 %v1808, %v1804
    %v1933 = vpack.c.b16 %v1809, %v1805
    %v1934 = vpack.c.b16 %v1810, %v1806
    %v1935 = vpack.c.b16 %v1815, %v1811
    %v1936 = vpack.c.b16 %v1816, %v1812
    %v1937 = vpack.c.b16 %v1817, %v1813
    %v1938 = vpack.c.b16 %v1818, %v1814
    %v1939 = vpack.c.b16 %v1823, %v1819
    %v1940 = vpack.c.b16 %v1824, %v1820
    %v1941 = vpack.c.b16 %v1825, %v1821
    %v1942 = vpack.c.b16 %v1826, %v1822
    %v1943 = vpack.c.b16 %v1831, %v1827
    %v1944 = vpack.c.b16 %v1832, %v1828
    %v1945 = vpack.c.b16 %v1833, %v1829
    %v1946 = vpack.c.b16 %v1834, %v1830
    %v1947 = vpack.c.b16 %v1839, %v1835
    %v1948 = vpack.c.b16 %v1840, %v1836
    %v1949 = vpack.c.b16 %v1841, %v1837
    %v1950 = vpack.c.b16 %v1842, %v1838
    %v1951 = vpack.c.b16 %v1847, %v1843
    %v1952 = vpack.c.b16 %v1848, %v1844
    %v1953 = vpack.c.b16 %v1849, %v1845
    %v1954 = vpack.c.b16 %v1850, %v1846
    %v1955 = vpack.c.b16 %v1855, %v1851
    %v1956 = vpack.c.b16 %v1856, %v1852
    %v1957 = vpack.c.b16 %v1857, %v1853
    %v1958 = vpack.c.b16 %v1858, %v1854
    %v1959 = vpack.c.b16 %v1863, %v1859
    %v1960 = vpack.c.b16 %v1864, %v1860
    %v1961 = vpack.c.b16 %v1865, %v1861
    %v1962 = vpack.c.b16 %v1866, %v1862
    %v1963 = vpack.c.b16 %v1871, %v1867
    %v1964 = vpack.c.b16 %v1872, %v1868
    %v1965 = vpack.c.b16 %v1873, %v1869
    %v1966 = vpack.c.b16 %v1874, %v1870
    %v1967 = vpack.c.b16 %v1879, %v1875
    %v1968 = vpack.c.b16 %v1880, %v1876
    %v1969 = vpack.c.b16 %v1881, %v1877
    %v1970 = vpack.c.b16 %v1882, %v1878
    %v1971 = vpack.c.b16 %v1887, %v1883
    %v1972 = vpack.c.b16 %v1888, %v1884
    %v1973 = vpack.c.b16 %v1889, %v1885
    %v1974 = vpack.c.b16 %v1890, %v1886
    %v1975 = vpack.c.b16 %v1895, %v1891
    %v1976 = vpack.c.b16 %v1896, %v1892
    %v1977 = vpack.c.b16 %v1897, %v1893
    %v1978 = vpack.c.b16 %v1898, %v1894
    %v1979 = vpack.c.b16 %v1903, %v1899
    %v1980 = vpack.c.b16 %v1904, %v1900
    %v1981 = vpack.c.b16 %v1905, %v1901
    %v1982 = vpack.c.b16 %v1906, %v1902
    %v1983 = vpack.c.b16 %v1911, %v1907
    %v1984 = vpack.c.b16 %v1912, %v1908
    %v1985 = vpack.c.b16 %v1913, %v1909
    %v1986 = vpack.c.b16 %v1914, %v1910
    %v1987 = vpack.c.b16 %v1919, %v1915
    %v1988 = vpack.c.b16 %v1920, %v1916
    %v1989 = vpack.c.b16 %v1921, %v1917
    %v1990 = vpack.c.b16 %v1922, %v1918
    %v1991 = vpack.c.b16 %v1927, %v1923
    %v1992 = vpack.c.b16 %v1928, %v1924
    %v1993 = vpack.c.b16 %v1929, %v1925
    %v1994 = vpack.c.b16 %v1930, %v1926
    %2059 = vmatprep.subr.bf16.mxu0 %v1960
    %2060 = vmatpush1.bf16.msra.mxu0 %v1959
    %2061 = vmatprep.subr.bf16.mxu0 %v1956
    %2062 = vmatpush1.bf16.msra.mxu0 %v1955
    %2063 = vmatprep.subr.bf16.mxu0 %v1952
    %2064 = vmatpush1.bf16.msra.mxu0 %v1951
    %2065 = vmatprep.subr.bf16.mxu0 %v1948
    %2066 = vmatpush1.bf16.msra.mxu0 %v1947
    %2067 = vmatprep.subr.bf16.mxu0 %v1944
    %2068 = vmatpush1.bf16.msra.mxu0 %v1943
    %2069 = vmatprep.subr.bf16.mxu0 %v1940
    %2070 = vmatpush1.bf16.msra.mxu0 %v1939
    %2071 = vmatprep.subr.bf16.mxu0 %v1936
    %2072 = vmatpush1.bf16.msra.mxu0 %v1935
    %2073 = vmatprep.subr.bf16.mxu0 %v1932
    %2074 = vmatpush1.bf16.msra.mxu0 %v1931
    %2075 = vmatprep.subr.bf16.mxu0 %v1992
    %2076 = vmatpush2.bf16.msra.mxu0 %v1991
    %2077 = vmatprep.subr.bf16.mxu0 %v1988
    %2078 = vmatpush2.bf16.msra.mxu0 %v1987
    %2079 = vmatprep.subr.bf16.mxu0 %v1984
    %2080 = vmatpush2.bf16.msra.mxu0 %v1983
    %2081 = vmatprep.subr.bf16.mxu0 %v1980
    %2082 = vmatpush2.bf16.msra.mxu0 %v1979
    %2083 = vmatprep.subr.bf16.mxu0 %v1976
    %2084 = vmatpush2.bf16.msra.mxu0 %v1975
    %2085 = vmatprep.subr.bf16.mxu0 %v1972
    %2086 = vmatpush2.bf16.msra.mxu0 %v1971
    %2087 = vmatprep.subr.bf16.mxu0 %v1968
    %2088 = vmatpush2.bf16.msra.mxu0 %v1967
    %2089 = vmatprep.subr.bf16.mxu0 %v1964
    %2090 = vmatpush2.bf16.msra.mxu0 %v1963
    %2091 = vmatprep.mubr.bf16.mxu0 %v1643
    %2092 = vmatmul.mubr.bf16.gmra.mxu0 %v1431
    %v2093 = vpop.f32.mrf.mxu0
    %v2094 = vadd.f32 %v1722, %v2093
    %v2095 = vpop.f32.mrf.mxu0
    %v2096 = vadd.f32 %v1726, %v2095
    %v2097 = vpop.f32.mrf.mxu0
    %v2098 = vadd.f32 %v1722, %v2097
    %v2099 = vpop.f32.mrf.mxu0
    %v2100 = vadd.f32 %v1726, %v2099
    %2101 = vmatprep.mubr.bf16.mxu0 %v1644
    %2102 = vmatmul.mubr.bf16.gmra.mxu0 %v1432
    %v2103 = vpop.f32.mrf.mxu0
    %v2104 = vadd.f32 %v1722, %v2103
    %v2105 = vpop.f32.mrf.mxu0
    %v2106 = vadd.f32 %v1726, %v2105
    %v2107 = vpop.f32.mrf.mxu0
    %v2108 = vadd.f32 %v1722, %v2107
    %v2109 = vpop.f32.mrf.mxu0
    %v2110 = vadd.f32 %v1726, %v2109
    %2111 = vmatprep.mubr.bf16.mxu0 %v1645
    %2112 = vmatmul.mubr.bf16.gmra.mxu0 %v1433
    %v2113 = vpop.f32.mrf.mxu0
    %v2114 = vadd.f32 %v1722, %v2113
    %v2115 = vpop.f32.mrf.mxu0
    %v2116 = vadd.f32 %v1726, %v2115
    %v2117 = vpop.f32.mrf.mxu0
    %v2118 = vadd.f32 %v1722, %v2117
    %v2119 = vpop.f32.mrf.mxu0
    %v2120 = vadd.f32 %v1726, %v2119
    %2121 = vmatprep.mubr.bf16.mxu0 %v1646
    %2122 = vmatmul.mubr.bf16.gmra.mxu0 %v1434
    %v2123 = vpop.f32.mrf.mxu0
    %v2124 = vadd.f32 %v1722, %v2123
    %v2125 = vpop.f32.mrf.mxu0
    %v2126 = vadd.f32 %v1726, %v2125
    %v2127 = vpop.f32.mrf.mxu0
    %v2128 = vadd.f32 %v1722, %v2127
    %v2129 = vpop.f32.mrf.mxu0
    %v2130 = vadd.f32 %v1726, %v2129
    %2131 = vmatprep.mubr.bf16.mxu0 %v1647
    %2132 = vmatmul.mubr.bf16.gmra.mxu0 %v1435
    %v2133 = vpop.f32.mrf.mxu0
    %v2134 = vadd.f32 %v1722, %v2133
    %v2135 = vpop.f32.mrf.mxu0
    %v2136 = vadd.f32 %v1726, %v2135
    %v2137 = vpop.f32.mrf.mxu0
    %v2138 = vadd.f32 %v1722, %v2137
    %v2139 = vpop.f32.mrf.mxu0
    %v2140 = vadd.f32 %v1726, %v2139
    %2141 = vmatprep.mubr.bf16.mxu0 %v1648
    %2142 = vmatmul.mubr.bf16.gmra.mxu0 %v1436
    %v2143 = vpop.f32.mrf.mxu0
    %v2144 = vadd.f32 %v1722, %v2143
    %v2145 = vpop.f32.mrf.mxu0
    %v2146 = vadd.f32 %v1726, %v2145
    %v2147 = vpop.f32.mrf.mxu0
    %v2148 = vadd.f32 %v1722, %v2147
    %v2149 = vpop.f32.mrf.mxu0
    %v2150 = vadd.f32 %v1726, %v2149
    %2151 = vmatprep.mubr.bf16.mxu0 %v1649
    %2152 = vmatmul.mubr.bf16.gmra.mxu0 %v1437
    %v2153 = vpop.f32.mrf.mxu0
    %v2154 = vadd.f32 %v1722, %v2153
    %v2155 = vpop.f32.mrf.mxu0
    %v2156 = vadd.f32 %v1726, %v2155
    %v2157 = vpop.f32.mrf.mxu0
    %v2158 = vadd.f32 %v1722, %v2157
    %v2159 = vpop.f32.mrf.mxu0
    %v2160 = vadd.f32 %v1726, %v2159
    %2161 = vmatprep.mubr.bf16.mxu0 %v1650
    %2162 = vmatmul.mubr.bf16.gmra.mxu0 %v1438
    %v2163 = vpop.f32.mrf.mxu0
    %v2164 = vadd.f32 %v1722, %v2163
    %v2165 = vpop.f32.mrf.mxu0
    %v2166 = vadd.f32 %v1726, %v2165
    %v2167 = vpop.f32.mrf.mxu0
    %v2168 = vadd.f32 %v1722, %v2167
    %v2169 = vpop.f32.mrf.mxu0
    %v2170 = vadd.f32 %v1726, %v2169
    %2171 = vdwg.mxu0
    %2172 = vmatprep.subr.bf16.mxu0 %v1962
    %2173 = vmatpush1.bf16.msra.mxu0 %v1961
    %2174 = vmatprep.subr.bf16.mxu0 %v1958
    %2175 = vmatpush1.bf16.msra.mxu0 %v1957
    %2176 = vmatprep.subr.bf16.mxu0 %v1954
    %2177 = vmatpush1.bf16.msra.mxu0 %v1953
    %2178 = vmatprep.subr.bf16.mxu0 %v1950
    %2179 = vmatpush1.bf16.msra.mxu0 %v1949
    %2180 = vmatprep.subr.bf16.mxu0 %v1946
    %2181 = vmatpush1.bf16.msra.mxu0 %v1945
    %2182 = vmatprep.subr.bf16.mxu0 %v1942
    %2183 = vmatpush1.bf16.msra.mxu0 %v1941
    %2184 = vmatprep.subr.bf16.mxu0 %v1938
    %2185 = vmatpush1.bf16.msra.mxu0 %v1937
    %2186 = vmatprep.subr.bf16.mxu0 %v1934
    %2187 = vmatpush1.bf16.msra.mxu0 %v1933
    %2188 = vmatprep.subr.bf16.mxu0 %v1994
    %2189 = vmatpush2.bf16.msra.mxu0 %v1993
    %2190 = vmatprep.subr.bf16.mxu0 %v1990
    %2191 = vmatpush2.bf16.msra.mxu0 %v1989
    %2192 = vmatprep.subr.bf16.mxu0 %v1986
    %2193 = vmatpush2.bf16.msra.mxu0 %v1985
    %2194 = vmatprep.subr.bf16.mxu0 %v1982
    %2195 = vmatpush2.bf16.msra.mxu0 %v1981
    %2196 = vmatprep.subr.bf16.mxu0 %v1978
    %2197 = vmatpush2.bf16.msra.mxu0 %v1977
    %2198 = vmatprep.subr.bf16.mxu0 %v1974
    %2199 = vmatpush2.bf16.msra.mxu0 %v1973
    %2200 = vmatprep.subr.bf16.mxu0 %v1970
    %2201 = vmatpush2.bf16.msra.mxu0 %v1969
    %2202 = vmatprep.subr.bf16.mxu0 %v1966
    %2203 = vmatpush2.bf16.msra.mxu0 %v1965
    %2204 = vmatprep.mubr.bf16.mxu0 %v1643
    %2205 = vmatmul.mubr.bf16.gmra.mxu0 %v1431
    %v2206 = vpop.f32.mrf.mxu0
    %v2207 = vadd.f32 %v1730, %v2206
    %v2208 = vpop.f32.mrf.mxu0
    %v2209 = vadd.f32 %v1734, %v2208
    %v2210 = vpop.f32.mrf.mxu0
    %v2211 = vadd.f32 %v1730, %v2210
    %v2212 = vpop.f32.mrf.mxu0
    %v2213 = vadd.f32 %v1734, %v2212
    %2214 = vmatprep.mubr.bf16.mxu0 %v1644
    %2215 = vmatmul.mubr.bf16.gmra.mxu0 %v1432
    %v2216 = vpop.f32.mrf.mxu0
    %v2217 = vadd.f32 %v1730, %v2216
    %v2218 = vpop.f32.mrf.mxu0
    %v2219 = vadd.f32 %v1734, %v2218
    %v2220 = vpop.f32.mrf.mxu0
    %v2221 = vadd.f32 %v1730, %v2220
    %v2222 = vpop.f32.mrf.mxu0
    %v2223 = vadd.f32 %v1734, %v2222
    %2224 = vmatprep.mubr.bf16.mxu0 %v1645
    %2225 = vmatmul.mubr.bf16.gmra.mxu0 %v1433
    %v2226 = vpop.f32.mrf.mxu0
    %v2227 = vadd.f32 %v1730, %v2226
    %v2228 = vpop.f32.mrf.mxu0
    %v2229 = vadd.f32 %v1734, %v2228
    %v2230 = vpop.f32.mrf.mxu0
    %v2231 = vadd.f32 %v1730, %v2230
    %v2232 = vpop.f32.mrf.mxu0
    %v2233 = vadd.f32 %v1734, %v2232
    %2234 = vmatprep.mubr.bf16.mxu0 %v1646
    %2235 = vmatmul.mubr.bf16.gmra.mxu0 %v1434
    %v2236 = vpop.f32.mrf.mxu0
    %v2237 = vadd.f32 %v1730, %v2236
    %v2238 = vpop.f32.mrf.mxu0
    %v2239 = vadd.f32 %v1734, %v2238
    %v2240 = vpop.f32.mrf.mxu0
    %v2241 = vadd.f32 %v1730, %v2240
    %v2242 = vpop.f32.mrf.mxu0
    %v2243 = vadd.f32 %v1734, %v2242
    %2244 = vmatprep.mubr.bf16.mxu0 %v1647
    %2245 = vmatmul.mubr.bf16.gmra.mxu0 %v1435
    %v2246 = vpop.f32.mrf.mxu0
    %v2247 = vadd.f32 %v1730, %v2246
    %v2248 = vpop.f32.mrf.mxu0
    %v2249 = vadd.f32 %v1734, %v2248
    %v2250 = vpop.f32.mrf.mxu0
    %v2251 = vadd.f32 %v1730, %v2250
    %v2252 = vpop.f32.mrf.mxu0
    %v2253 = vadd.f32 %v1734, %v2252
    %2254 = vmatprep.mubr.bf16.mxu0 %v1648
    %2255 = vmatmul.mubr.bf16.gmra.mxu0 %v1436
    %v2256 = vpop.f32.mrf.mxu0
    %v2257 = vadd.f32 %v1730, %v2256
    %v2258 = vpop.f32.mrf.mxu0
    %v2259 = vadd.f32 %v1734, %v2258
    %v2260 = vpop.f32.mrf.mxu0
    %v2261 = vadd.f32 %v1730, %v2260
    %v2262 = vpop.f32.mrf.mxu0
    %v2263 = vadd.f32 %v1734, %v2262
    %2264 = vmatprep.mubr.bf16.mxu0 %v1649
    %2265 = vmatmul.mubr.bf16.gmra.mxu0 %v1437
    %v2266 = vpop.f32.mrf.mxu0
    %v2267 = vadd.f32 %v1730, %v2266
    %v2268 = vpop.f32.mrf.mxu0
    %v2269 = vadd.f32 %v1734, %v2268
    %v2270 = vpop.f32.mrf.mxu0
    %v2271 = vadd.f32 %v1730, %v2270
    %v2272 = vpop.f32.mrf.mxu0
    %v2273 = vadd.f32 %v1734, %v2272
    %2274 = vmatprep.mubr.bf16.mxu0 %v1650
    %2275 = vmatmul.mubr.bf16.gmra.mxu0 %v1438
    %v2276 = vpop.f32.mrf.mxu0
    %v2277 = vadd.f32 %v1730, %v2276
    %v2278 = vpop.f32.mrf.mxu0
    %v2279 = vadd.f32 %v1734, %v2278
    %v2280 = vpop.f32.mrf.mxu0
    %v2281 = vadd.f32 %v1730, %v2280
    %v2282 = vpop.f32.mrf.mxu0
    %v2283 = vadd.f32 %v1734, %v2282
    %2284 = vdwg.mxu0
    %v2285 = vxor.u32 %v2094, 2147483648
    %v2286 = vxor.u32 %v2098, 2147483648
    %v2287 = vxor.u32 %v2104, 2147483648
    %v2288 = vxor.u32 %v2108, 2147483648
    %v2289 = vxor.u32 %v2114, 2147483648
    %v2290 = vxor.u32 %v2118, 2147483648
    %v2291 = vxor.u32 %v2124, 2147483648
    %v2292 = vxor.u32 %v2128, 2147483648
    %v2293 = vxor.u32 %v2134, 2147483648
    %v2294 = vxor.u32 %v2138, 2147483648
    %v2295 = vxor.u32 %v2144, 2147483648
    %v2296 = vxor.u32 %v2148, 2147483648
    %v2297 = vxor.u32 %v2154, 2147483648
    %v2298 = vxor.u32 %v2158, 2147483648
    %v2299 = vxor.u32 %v2164, 2147483648
    %v2300 = vxor.u32 %v2168, 2147483648
    %v2301 = vmul.f32 %v2285, 1.442695
    %v2302 = vpow.pop %v2301
    %v2303 = vmul.f32 %v2286, 1.442695
    %v2304 = vpow.pop %v2303
    %v2305 = vmul.f32 %v2287, 1.442695
    %v2306 = vpow.pop %v2305
    %v2307 = vmul.f32 %v2288, 1.442695
    %v2308 = vpow.pop %v2307
    %v2309 = vmul.f32 %v2289, 1.442695
    %v2310 = vpow.pop %v2309
    %v2311 = vmul.f32 %v2290, 1.442695
    %v2312 = vpow.pop %v2311
    %v2313 = vmul.f32 %v2291, 1.442695
    %v2314 = vpow.pop %v2313
    %v2315 = vmul.f32 %v2292, 1.442695
    %v2316 = vpow.pop %v2315
    %v2317 = vmul.f32 %v2293, 1.442695
    %v2318 = vpow.pop %v2317
    %v2319 = vmul.f32 %v2294, 1.442695
    %v2320 = vpow.pop %v2319
    %v2321 = vmul.f32 %v2295, 1.442695
    %v2322 = vpow.pop %v2321
    %v2323 = vmul.f32 %v2296, 1.442695
    %v2324 = vpow.pop %v2323
    %v2325 = vmul.f32 %v2297, 1.442695
    %v2326 = vpow.pop %v2325
    %v2327 = vmul.f32 %v2298, 1.442695
    %v2328 = vpow.pop %v2327
    %v2329 = vmul.f32 %v2299, 1.442695
    %v2330 = vpow.pop %v2329
    %v2331 = vmul.f32 %v2300, 1.442695
    %v2332 = vpow.pop %v2331
    %v2333 = vadd.f32 %v2302, 1.0
    %v2334 = vadd.f32 %v2304, 1.0
    %v2335 = vadd.f32 %v2306, 1.0
    %v2336 = vadd.f32 %v2308, 1.0
    %v2337 = vadd.f32 %v2310, 1.0
    %v2338 = vadd.f32 %v2312, 1.0
    %v2339 = vadd.f32 %v2314, 1.0
    %v2340 = vadd.f32 %v2316, 1.0
    %v2341 = vadd.f32 %v2318, 1.0
    %v2342 = vadd.f32 %v2320, 1.0
    %v2343 = vadd.f32 %v2322, 1.0
    %v2344 = vadd.f32 %v2324, 1.0
    %v2345 = vadd.f32 %v2326, 1.0
    %v2346 = vadd.f32 %v2328, 1.0
    %v2347 = vadd.f32 %v2330, 1.0
    %v2348 = vadd.f32 %v2332, 1.0
    %v2349 = vrcp.pop %v2333
    %v2350 = vmul.f32 1.0, %v2349
    %v2351 = vrcp.pop %v2334
    %v2352 = vmul.f32 1.0, %v2351
    %v2353 = vrcp.pop %v2335
    %v2354 = vmul.f32 1.0, %v2353
    %v2355 = vrcp.pop %v2336
    %v2356 = vmul.f32 1.0, %v2355
    %v2357 = vrcp.pop %v2337
    %v2358 = vmul.f32 1.0, %v2357
    %v2359 = vrcp.pop %v2338
    %v2360 = vmul.f32 1.0, %v2359
    %v2361 = vrcp.pop %v2339
    %v2362 = vmul.f32 1.0, %v2361
    %v2363 = vrcp.pop %v2340
    %v2364 = vmul.f32 1.0, %v2363
    %v2365 = vrcp.pop %v2341
    %v2366 = vmul.f32 1.0, %v2365
    %v2367 = vrcp.pop %v2342
    %v2368 = vmul.f32 1.0, %v2367
    %v2369 = vrcp.pop %v2343
    %v2370 = vmul.f32 1.0, %v2369
    %v2371 = vrcp.pop %v2344
    %v2372 = vmul.f32 1.0, %v2371
    %v2373 = vrcp.pop %v2345
    %v2374 = vmul.f32 1.0, %v2373
    %v2375 = vrcp.pop %v2346
    %v2376 = vmul.f32 1.0, %v2375
    %v2377 = vrcp.pop %v2347
    %v2378 = vmul.f32 1.0, %v2377
    %v2379 = vrcp.pop %v2348
    %v2380 = vmul.f32 1.0, %v2379
    %v2381 = vxor.u32 %v2096, 2147483648
    %v2382 = vxor.u32 %v2100, 2147483648
    %v2383 = vxor.u32 %v2106, 2147483648
    %v2384 = vxor.u32 %v2110, 2147483648
    %v2385 = vxor.u32 %v2116, 2147483648
    %v2386 = vxor.u32 %v2120, 2147483648
    %v2387 = vxor.u32 %v2126, 2147483648
    %v2388 = vxor.u32 %v2130, 2147483648
    %v2389 = vxor.u32 %v2136, 2147483648
    %v2390 = vxor.u32 %v2140, 2147483648
    %v2391 = vxor.u32 %v2146, 2147483648
    %v2392 = vxor.u32 %v2150, 2147483648
    %v2393 = vxor.u32 %v2156, 2147483648
    %v2394 = vxor.u32 %v2160, 2147483648
    %v2395 = vxor.u32 %v2166, 2147483648
    %v2396 = vxor.u32 %v2170, 2147483648
    %v2397 = vmul.f32 %v2381, 1.442695
    %v2398 = vpow.pop %v2397
    %v2399 = vmul.f32 %v2382, 1.442695
    %v2400 = vpow.pop %v2399
    %v2401 = vmul.f32 %v2383, 1.442695
    %v2402 = vpow.pop %v2401
    %v2403 = vmul.f32 %v2384, 1.442695
    %v2404 = vpow.pop %v2403
    %v2405 = vmul.f32 %v2385, 1.442695
    %v2406 = vpow.pop %v2405
    %v2407 = vmul.f32 %v2386, 1.442695
    %v2408 = vpow.pop %v2407
    %v2409 = vmul.f32 %v2387, 1.442695
    %v2410 = vpow.pop %v2409
    %v2411 = vmul.f32 %v2388, 1.442695
    %v2412 = vpow.pop %v2411
    %v2413 = vmul.f32 %v2389, 1.442695
    %v2414 = vpow.pop %v2413
    %v2415 = vmul.f32 %v2390, 1.442695
    %v2416 = vpow.pop %v2415
    %v2417 = vmul.f32 %v2391, 1.442695
    %v2418 = vpow.pop %v2417
    %v2419 = vmul.f32 %v2392, 1.442695
    %v2420 = vpow.pop %v2419
    %v2421 = vmul.f32 %v2393, 1.442695
    %v2422 = vpow.pop %v2421
    %v2423 = vmul.f32 %v2394, 1.442695
    %v2424 = vpow.pop %v2423
    %v2425 = vmul.f32 %v2395, 1.442695
    %v2426 = vpow.pop %v2425
    %v2427 = vmul.f32 %v2396, 1.442695
    %v2428 = vpow.pop %v2427
    %v2429 = vadd.f32 %v2398, 1.0
    %v2430 = vadd.f32 %v2400, 1.0
    %v2431 = vadd.f32 %v2402, 1.0
    %v2432 = vadd.f32 %v2404, 1.0
    %v2433 = vadd.f32 %v2406, 1.0
    %v2434 = vadd.f32 %v2408, 1.0
    %v2435 = vadd.f32 %v2410, 1.0
    %v2436 = vadd.f32 %v2412, 1.0
    %v2437 = vadd.f32 %v2414, 1.0
    %v2438 = vadd.f32 %v2416, 1.0
    %v2439 = vadd.f32 %v2418, 1.0
    %v2440 = vadd.f32 %v2420, 1.0
    %v2441 = vadd.f32 %v2422, 1.0
    %v2442 = vadd.f32 %v2424, 1.0
    %v2443 = vadd.f32 %v2426, 1.0
    %v2444 = vadd.f32 %v2428, 1.0
    %v2445 = vrcp.pop %v2429
    %v2446 = vmul.f32 1.0, %v2445
    %v2447 = vrcp.pop %v2430
    %v2448 = vmul.f32 1.0, %v2447
    %v2449 = vrcp.pop %v2431
    %v2450 = vmul.f32 1.0, %v2449
    %v2451 = vrcp.pop %v2432
    %v2452 = vmul.f32 1.0, %v2451
    %v2453 = vrcp.pop %v2433
    %v2454 = vmul.f32 1.0, %v2453
    %v2455 = vrcp.pop %v2434
    %v2456 = vmul.f32 1.0, %v2455
    %v2457 = vrcp.pop %v2435
    %v2458 = vmul.f32 1.0, %v2457
    %v2459 = vrcp.pop %v2436
    %v2460 = vmul.f32 1.0, %v2459
    %v2461 = vrcp.pop %v2437
    %v2462 = vmul.f32 1.0, %v2461
    %v2463 = vrcp.pop %v2438
    %v2464 = vmul.f32 1.0, %v2463
    %v2465 = vrcp.pop %v2439
    %v2466 = vmul.f32 1.0, %v2465
    %v2467 = vrcp.pop %v2440
    %v2468 = vmul.f32 1.0, %v2467
    %v2469 = vrcp.pop %v2441
    %v2470 = vmul.f32 1.0, %v2469
    %v2471 = vrcp.pop %v2442
    %v2472 = vmul.f32 1.0, %v2471
    %v2473 = vrcp.pop %v2443
    %v2474 = vmul.f32 1.0, %v2473
    %v2475 = vrcp.pop %v2444
    %v2476 = vmul.f32 1.0, %v2475
    %v2477 = vtanh.pop %v2207
    %v2478 = vtanh.pop %v2211
    %v2479 = vtanh.pop %v2217
    %v2480 = vtanh.pop %v2221
    %v2481 = vtanh.pop %v2227
    %v2482 = vtanh.pop %v2231
    %v2483 = vtanh.pop %v2237
    %v2484 = vtanh.pop %v2241
    %v2485 = vtanh.pop %v2247
    %v2486 = vtanh.pop %v2251
    %v2487 = vtanh.pop %v2257
    %v2488 = vtanh.pop %v2261
    %v2489 = vtanh.pop %v2267
    %v2490 = vtanh.pop %v2271
    %v2491 = vtanh.pop %v2277
    %v2492 = vtanh.pop %v2281
    %v2493 = vxor.u32 %v2209, 2147483648
    %v2494 = vxor.u32 %v2213, 2147483648
    %v2495 = vxor.u32 %v2219, 2147483648
    %v2496 = vxor.u32 %v2223, 2147483648
    %v2497 = vxor.u32 %v2229, 2147483648
    %v2498 = vxor.u32 %v2233, 2147483648
    %v2499 = vxor.u32 %v2239, 2147483648
    %v2500 = vxor.u32 %v2243, 2147483648
    %v2501 = vxor.u32 %v2249, 2147483648
    %v2502 = vxor.u32 %v2253, 2147483648
    %v2503 = vxor.u32 %v2259, 2147483648
    %v2504 = vxor.u32 %v2263, 2147483648
    %v2505 = vxor.u32 %v2269, 2147483648
    %v2506 = vxor.u32 %v2273, 2147483648
    %v2507 = vxor.u32 %v2279, 2147483648
    %v2508 = vxor.u32 %v2283, 2147483648
    %v2509 = vmul.f32 %v2493, 1.442695
    %v2510 = vpow.pop %v2509
    %v2511 = vmul.f32 %v2494, 1.442695
    %v2512 = vpow.pop %v2511
    %v2513 = vmul.f32 %v2495, 1.442695
    %v2514 = vpow.pop %v2513
    %v2515 = vmul.f32 %v2496, 1.442695
    %v2516 = vpow.pop %v2515
    %v2517 = vmul.f32 %v2497, 1.442695
    %v2518 = vpow.pop %v2517
    %v2519 = vmul.f32 %v2498, 1.442695
    %v2520 = vpow.pop %v2519
    %v2521 = vmul.f32 %v2499, 1.442695
    %v2522 = vpow.pop %v2521
    %v2523 = vmul.f32 %v2500, 1.442695
    %v2524 = vpow.pop %v2523
    %v2525 = vmul.f32 %v2501, 1.442695
    %v2526 = vpow.pop %v2525
    %v2527 = vmul.f32 %v2502, 1.442695
    %v2528 = vpow.pop %v2527
    %v2529 = vmul.f32 %v2503, 1.442695
    %v2530 = vpow.pop %v2529
    %v2531 = vmul.f32 %v2504, 1.442695
    %v2532 = vpow.pop %v2531
    %v2533 = vmul.f32 %v2505, 1.442695
    %v2534 = vpow.pop %v2533
    %v2535 = vmul.f32 %v2506, 1.442695
    %v2536 = vpow.pop %v2535
    %v2537 = vmul.f32 %v2507, 1.442695
    %v2538 = vpow.pop %v2537
    %v2539 = vmul.f32 %v2508, 1.442695
    %v2540 = vpow.pop %v2539
    %v2541 = vadd.f32 %v2510, 1.0
    %v2542 = vadd.f32 %v2512, 1.0
    %v2543 = vadd.f32 %v2514, 1.0
    %v2544 = vadd.f32 %v2516, 1.0
    %v2545 = vadd.f32 %v2518, 1.0
    %v2546 = vadd.f32 %v2520, 1.0
    %v2547 = vadd.f32 %v2522, 1.0
    %v2548 = vadd.f32 %v2524, 1.0
    %v2549 = vadd.f32 %v2526, 1.0
    %v2550 = vadd.f32 %v2528, 1.0
    %v2551 = vadd.f32 %v2530, 1.0
    %v2552 = vadd.f32 %v2532, 1.0
    %v2553 = vadd.f32 %v2534, 1.0
    %v2554 = vadd.f32 %v2536, 1.0
    %v2555 = vadd.f32 %v2538, 1.0
    %v2556 = vadd.f32 %v2540, 1.0
    %v2557 = vrcp.pop %v2541
    %v2558 = vmul.f32 1.0, %v2557
    %v2559 = vrcp.pop %v2542
    %v2560 = vmul.f32 1.0, %v2559
    %v2561 = vrcp.pop %v2543
    %v2562 = vmul.f32 1.0, %v2561
    %v2563 = vrcp.pop %v2544
    %v2564 = vmul.f32 1.0, %v2563
    %v2565 = vrcp.pop %v2545
    %v2566 = vmul.f32 1.0, %v2565
    %v2567 = vrcp.pop %v2546
    %v2568 = vmul.f32 1.0, %v2567
    %v2569 = vrcp.pop %v2547
    %v2570 = vmul.f32 1.0, %v2569
    %v2571 = vrcp.pop %v2548
    %v2572 = vmul.f32 1.0, %v2571
    %v2573 = vrcp.pop %v2549
    %v2574 = vmul.f32 1.0, %v2573
    %v2575 = vrcp.pop %v2550
    %v2576 = vmul.f32 1.0, %v2575
    %v2577 = vrcp.pop %v2551
    %v2578 = vmul.f32 1.0, %v2577
    %v2579 = vrcp.pop %v2552
    %v2580 = vmul.f32 1.0, %v2579
    %v2581 = vrcp.pop %v2553
    %v2582 = vmul.f32 1.0, %v2581
    %v2583 = vrcp.pop %v2554
    %v2584 = vmul.f32 1.0, %v2583
    %v2585 = vrcp.pop %v2555
    %v2586 = vmul.f32 1.0, %v2585
    %v2587 = vrcp.pop %v2556
    %v2588 = vmul.f32 1.0, %v2587
    %v2589 = vmul.f32 %v2446, %v1474
    %v2590 = vmul.f32 %v2448, %v1475
    %v2591 = vmul.f32 %v2450, %v1476
    %v2592 = vmul.f32 %v2452, %v1477
    %v2593 = vmul.f32 %v2454, %v1478
    %v2594 = vmul.f32 %v2456, %v1479
    %v2595 = vmul.f32 %v2458, %v1480
    %v2596 = vmul.f32 %v2460, %v1481
    %v2597 = vmul.f32 %v2462, %v1482
    %v2598 = vmul.f32 %v2464, %v1483
    %v2599 = vmul.f32 %v2466, %v1484
    %v2600 = vmul.f32 %v2468, %v1485
    %v2601 = vmul.f32 %v2470, %v1486
    %v2602 = vmul.f32 %v2472, %v1487
    %v2603 = vmul.f32 %v2474, %v1488
    %v2604 = vmul.f32 %v2476, %v1489
    %v2605 = vmul.f32 %v2350, %v2477
    %v2606 = vmul.f32 %v2352, %v2478
    %v2607 = vmul.f32 %v2354, %v2479
    %v2608 = vmul.f32 %v2356, %v2480
    %v2609 = vmul.f32 %v2358, %v2481
    %v2610 = vmul.f32 %v2360, %v2482
    %v2611 = vmul.f32 %v2362, %v2483
    %v2612 = vmul.f32 %v2364, %v2484
    %v2613 = vmul.f32 %v2366, %v2485
    %v2614 = vmul.f32 %v2368, %v2486
    %v2615 = vmul.f32 %v2370, %v2487
    %v2616 = vmul.f32 %v2372, %v2488
    %v2617 = vmul.f32 %v2374, %v2489
    %v2618 = vmul.f32 %v2376, %v2490
    %v2619 = vmul.f32 %v2378, %v2491
    %v2620 = vmul.f32 %v2380, %v2492
    %v2621 = vadd.f32 %v2589, %v2605
    %v2622 = vadd.f32 %v2590, %v2606
    %v2623 = vadd.f32 %v2591, %v2607
    %v2624 = vadd.f32 %v2592, %v2608
    %v2625 = vadd.f32 %v2593, %v2609
    %v2626 = vadd.f32 %v2594, %v2610
    %v2627 = vadd.f32 %v2595, %v2611
    %v2628 = vadd.f32 %v2596, %v2612
    %v2629 = vadd.f32 %v2597, %v2613
    %v2630 = vadd.f32 %v2598, %v2614
    %v2631 = vadd.f32 %v2599, %v2615
    %v2632 = vadd.f32 %v2600, %v2616
    %v2633 = vadd.f32 %v2601, %v2617
    %v2634 = vadd.f32 %v2602, %v2618
    %v2635 = vadd.f32 %v2603, %v2619
    %v2636 = vadd.f32 %v2604, %v2620
    %v2637 = vtanh.pop %v2621
    %v2638 = vtanh.pop %v2622
    %v2639 = vtanh.pop %v2623
    %v2640 = vtanh.pop %v2624
    %v2641 = vtanh.pop %v2625
    %v2642 = vtanh.pop %v2626
    %v2643 = vtanh.pop %v2627
    %v2644 = vtanh.pop %v2628
    %v2645 = vtanh.pop %v2629
    %v2646 = vtanh.pop %v2630
    %v2647 = vtanh.pop %v2631
    %v2648 = vtanh.pop %v2632
    %v2649 = vtanh.pop %v2633
    %v2650 = vtanh.pop %v2634
    %v2651 = vtanh.pop %v2635
    %v2652 = vtanh.pop %v2636
    %v2653 = vmul.f32 %v2558, %v2637
    %v2654 = vmul.f32 %v2560, %v2638
    %v2655 = vmul.f32 %v2562, %v2639
    %v2656 = vmul.f32 %v2564, %v2640
    %v2657 = vmul.f32 %v2566, %v2641
    %v2658 = vmul.f32 %v2568, %v2642
    %v2659 = vmul.f32 %v2570, %v2643
    %v2660 = vmul.f32 %v2572, %v2644
    %v2661 = vmul.f32 %v2574, %v2645
    %v2662 = vmul.f32 %v2576, %v2646
    %v2663 = vmul.f32 %v2578, %v2647
    %v2664 = vmul.f32 %v2580, %v2648
    %v2665 = vmul.f32 %v2582, %v2649
    %v2666 = vmul.f32 %v2584, %v2650
    %v2667 = vmul.f32 %v2586, %v2651
    %v2668 = vmul.f32 %v2588, %v2652
    %s2669 = scalar_lea.vmem [#allocation13], 128
    %2670 = vst [vmem:[%s2669] sm:$0xff] %v2653
    %2671 = vst [vmem:[%s2669 + $0x8] sm:$0xff] %v2654
    %2672 = vst [vmem:[%s2669 + $0x10] sm:$0xff] %v2655
    %2673 = vst [vmem:[%s2669 + $0x18] sm:$0xff] %v2656
    %2674 = vst [vmem:[%s2669 + $0x20] sm:$0xff] %v2657
    %2675 = vst [vmem:[%s2669 + $0x28] sm:$0xff] %v2658
    %2676 = vst [vmem:[%s2669 + $0x30] sm:$0xff] %v2659
    %2677 = vst [vmem:[%s2669 + $0x38] sm:$0xff] %v2660
    %2678 = vst [vmem:[%s2669 + $0x40] sm:$0xff] %v2661
    %2679 = vst [vmem:[%s2669 + $0x48] sm:$0xff] %v2662
    %2680 = vst [vmem:[%s2669 + $0x50] sm:$0xff] %v2663
    %2681 = vst [vmem:[%s2669 + $0x58] sm:$0xff] %v2664
    %2682 = vst [vmem:[%s2669 + $0x60] sm:$0xff] %v2665
    %2683 = vst [vmem:[%s2669 + $0x68] sm:$0xff] %v2666
    %2684 = vst [vmem:[%s2669 + $0x70] sm:$0xff] %v2667
    %2685 = vst [vmem:[%s2669 + $0x78] sm:$0xff] %v2668
    %s2686 = scalar_lea.vmem [#allocation14], 128
    %2687 = vst [vmem:[%s2686] sm:$0xff] %v2621
    %2688 = vst [vmem:[%s2686 + $0x8] sm:$0xff] %v2622
    %2689 = vst [vmem:[%s2686 + $0x10] sm:$0xff] %v2623
    %2690 = vst [vmem:[%s2686 + $0x18] sm:$0xff] %v2624
    %2691 = vst [vmem:[%s2686 + $0x20] sm:$0xff] %v2625
    %2692 = vst [vmem:[%s2686 + $0x28] sm:$0xff] %v2626
    %2693 = vst [vmem:[%s2686 + $0x30] sm:$0xff] %v2627
    %2694 = vst [vmem:[%s2686 + $0x38] sm:$0xff] %v2628
    %2695 = vst [vmem:[%s2686 + $0x40] sm:$0xff] %v2629
    %2696 = vst [vmem:[%s2686 + $0x48] sm:$0xff] %v2630
    %2697 = vst [vmem:[%s2686 + $0x50] sm:$0xff] %v2631
    %2698 = vst [vmem:[%s2686 + $0x58] sm:$0xff] %v2632
    %2699 = vst [vmem:[%s2686 + $0x60] sm:$0xff] %v2633
    %2700 = vst [vmem:[%s2686 + $0x68] sm:$0xff] %v2634
    %2701 = vst [vmem:[%s2686 + $0x70] sm:$0xff] %v2635
    %2702 = vst [vmem:[%s2686 + $0x78] sm:$0xff] %v2636
    // Predicated region
    $region50: #{tpu_custom_call.1} parent=1 // pred_check
      _
    $region51: #{tpu_custom_call.1} parent=1 // pred_check_branch
      %2704 = sbr.rel (0) target = $region53
    $region52: #{tpu_custom_call.1} parent=1 // pred_region
      %s2706 = ssub.s32 4096, 4096
      %2707 = vsyncadd [#allocation4], %s2706
      %s2708 = sshll.u32 [#allocation13], 4
      %s2709 = int_to_ptr.vmem [resolvable:$true] %s2708
      %2714 = dma.vmem_to_hbm [thread:$0]  %s2709, 4096, %s6, [#allocation4], 128, 128, 8
    $region53: #{tpu_custom_call.1} parent=1 // pred_fallthru
      _
    // Predicated region
    $region54: #{tpu_custom_call.1} parent=1 // pred_check
      _
    $region55: #{tpu_custom_call.1} parent=1 // pred_check_branch
      %2716 = sbr.rel (0) target = $region57
    $region56: #{tpu_custom_call.1} parent=1 // pred_region
      %s2718 = ssub.s32 4096, 4096
      %2719 = vsyncadd [#allocation15], %s2718
      %s2720 = sshll.u32 [#allocation14], 4
      %s2721 = int_to_ptr.vmem [resolvable:$true] %s2720
      %2726 = dma.vmem_to_hbm [thread:$0]  %s2721, 4096, %s7, [#allocation15], 128, 128, 8
    $region57: #{tpu_custom_call.1} parent=1 // pred_fallthru
      _
    // Predicated region
    $region58: #{tpu_custom_call.1} parent=1 // pred_check
      _
    $region59: #{tpu_custom_call.1} parent=1 // pred_check_branch
      %2728 = sbr.rel (0) target = $region61
    $region60: #{tpu_custom_call.1} parent=1 // pred_region
      %2729 = dma.done [#allocation4], 4096
    $region61: #{tpu_custom_call.1} parent=1 // pred_fallthru
      _
    // Predicated region
    $region62: #{tpu_custom_call.1} parent=1 // pred_check
      _
    $region63: #{tpu_custom_call.1} parent=1 // pred_check_branch
      %2731 = sbr.rel (0) target = $region65
    $region64: #{tpu_custom_call.1} parent=1 // pred_region
      %2732 = dma.done [#allocation15], 4096
    $region65: #{tpu_custom_call.1} parent=1 // pred_fallthru
      _
    %2733 = vsyncpa [#allocation3], 1
    %2734 = vsyncpa [#allocation6], 1
    %2735 = vsyncpa [#allocation9], 1
    %2736 = vsyncpa [#allocation12], 1
    %2737 = vsyncpa [#allocation4], 1
    %2738 = vsyncpa [#allocation15], 1

</llo_original>
